<compile_context>
chip_gen: v5e
topology: v5e:2x2
jax: 0.10.0
libtpu: 0.0.40
codegen_flags: <defaults>
</compile_context>

<pallas_src>
import jax
import jax.numpy as jnp
import numpy as np
from jax import lax
from jax.experimental import pallas as pl
from jax.experimental.pallas import tpu as pltpu


def _round_up(a, m):
    return (a + m - 1) // m * m


def _lstm_dense_kernel(x_ref, w_ih0_ref, w_hh0_ref, w_cat_ref, b_ref,
                       dw_ref, db_ref, y_ref, h_sc, c_sc, xg_sc, htop_sc):
    L, _, H = h_sc.shape
    Tb = xg_sc.shape[0]

    # h_0 / c_0 are zeros (module buffers) on the first time block; afterwards
    # they carry across the sequential grid axis in VMEM scratch.
    @pl.when(pl.program_id(0) == 0)
    def _():
        h_sc[...] = jnp.zeros_like(h_sc)
        c_sc[...] = jnp.zeros_like(c_sc)

    # ---- Phase 1: layer-0 input projection for the whole block (single
    # (Tb, Din) x (Din, 4H) MXU matmul), layer-0 bias folded in.
    xg_sc[...] = (jnp.dot(x_ref[...], w_ih0_ref[...],
                          preferred_element_type=jnp.float32) + b_ref[0])

    # Hoist loop-invariant weights into values (vregs) only while they are
    # small; at larger H keep reading from VMEM to avoid guaranteed spills.
    hoist = H <= 64
    if hoist:
        w_hh0 = w_hh0_ref[...]
        w_cat = [w_cat_ref[l] for l in range(L - 1)]
        b_up = [b_ref[l] for l in range(1, L)]

    def layer0_gates(xg_row, h_prev):
        w = w_hh0 if hoist else w_hh0_ref[...]
        return xg_row + jnp.dot(h_prev, w, preferred_element_type=jnp.float32)

    def upper_gates(l, h_below, h_prev):
        # Fused (1, 2H) x (2H, 4H) matmul: input + recurrent weights packed.
        w = w_cat[l - 1] if hoist else w_cat_ref[l - 1]
        b = b_up[l - 1] if hoist else b_ref[l]
        hh = jnp.concatenate([h_below, h_prev], axis=1)        # (1, 2H)
        return jnp.dot(hh, w, preferred_element_type=jnp.float32) + b

    def lstm_cell(gates, c_prev):
        sig = jax.nn.sigmoid(gates)                            # i, f, o
        g = jnp.tanh(gates[:, 2 * H:3 * H])                    # only g slice
        c_new = sig[:, H:2 * H] * c_prev + sig[:, 0:H] * g
        h_new = sig[:, 3 * H:4 * H] * jnp.tanh(c_new)
        return h_new, c_new

    def superstep(s, active):
        # Wavefront super-step: layer l in `active` advances to block time s-l.
        # Reads use only pre-super-step state, so the per-layer chains are
        # mutually independent and can pipeline through MXU/EUP.
        h_old = [h_sc[l] for l in range(L)]
        c_old = [c_sc[l] for l in range(L)]
        gates = {}
        for l in active:
            if l == 0:
                gates[0] = layer0_gates(xg_sc[pl.ds(s, 1), :], h_old[0])
            else:
                gates[l] = upper_gates(l, h_old[l - 1], h_old[l])
        for l in active:
            h_new, c_new = lstm_cell(gates[l], c_old[l])
            h_sc[l] = h_new
            c_sc[l] = c_new
            if l == L - 1:
                htop_sc[pl.ds(s - (L - 1), 1), :] = h_new

    # ---- Phase 2: recurrence over the block, wavefront-scheduled.
    for s in range(L - 1):                                     # pipeline fill
        superstep(s, list(range(s + 1)))

    steady = Tb - (L - 1)
    if steady > 0:
        def body(s, carry):
            superstep(s, list(range(L)))
            return carry
        lax.fori_loop(L - 1, Tb, body, 0,
                      unroll=max(1, min(8, steady)))           # partial unroll

    for s in range(Tb, Tb + L - 1):                            # pipeline drain
        superstep(s, [l for l in range(L) if s - l < Tb])

    # ---- Phase 3: dense head for the whole block -> one matmul, lane-dense
    # (Opad = 128-padded) store.
    y_ref[...] = (jnp.dot(htop_sc[...], dw_ref[...],
                          preferred_element_type=jnp.float32) + db_ref[...])


def lstm_dense_forward(x, params, time_block=None):
    """x: (1, T, input_dim) float32 -> (1, T, output_dim) float32."""
    w_ih0, w_hh0, w_cat, b, dw, db = (params["w_ih0"], params["w_hh0"],
                                      params["w_cat"], params["b"],
                                      params["dw"], params["db"])
    O = params["output_dim"]
    B, T, Din = x.shape
    assert B == 1, "module fixes batch_size = 1"
    L = b.shape[0]
    H = w_hh0.shape[0]
    Lc = w_cat.shape[0]
    Opad = dw.shape[1]

    # Time blocking: multiple of 8 sublanes, capped at 512 steps per block.
    if time_block is None:
        Tb = min(_round_up(T, 8), 512)
    else:
        Tb = _round_up(time_block, 8)
    Tpad = _round_up(T, Tb)
    assert Tb >= L, "time block must cover the layer wavefront"

    xt = x[0]                                  # (T, Din), batch squeezed
    if Tpad > T:
        # Padded tail steps run the recurrence with zero x rows; their outputs
        # are sliced off and the final (h, c) state is never exposed.
        xt = jnp.pad(xt, ((0, Tpad - T), (0, 0)))

    grid_spec = pltpu.PrefetchScalarGridSpec(
        num_scalar_prefetch=0,
        grid=(Tpad // Tb,),
        in_specs=[
            pl.BlockSpec((Tb, Din), lambda tb: (tb, 0)),          # x block
            pl.BlockSpec((Din, 4 * H), lambda tb: (0, 0)),        # W_ih layer 0
            pl.BlockSpec((H, 4 * H), lambda tb: (0, 0)),          # W_hh layer 0
            pl.BlockSpec((Lc, 2 * H, 4 * H), lambda tb: (0, 0, 0)),  # fused W layers>=1
            pl.BlockSpec((L, 1, 4 * H), lambda tb: (0, 0, 0)),    # combined bias
            pl.BlockSpec((H, Opad), lambda tb: (0, 0)),           # dense W (lane-padded)
            pl.BlockSpec((1, Opad), lambda tb: (0, 0)),           # dense b (lane-padded)
        ],
        out_specs=pl.BlockSpec((Tb, Opad), lambda tb: (tb, 0)),
        scratch_shapes=[
            pltpu.VMEM((L, 1, H), jnp.float32),      # h state (carried across blocks)
            pltpu.VMEM((L, 1, H), jnp.float32),      # c state
            pltpu.VMEM((Tb, 4 * H), jnp.float32),    # layer-0 gate preactivations
            pltpu.VMEM((Tb, H), jnp.float32),        # top-layer h for the block
        ],
    )

    y = pl.pallas_call(
        _lstm_dense_kernel,
        out_shape=jax.ShapeDtypeStruct((Tpad, Opad), jnp.float32),
        grid_spec=grid_spec,
        # Must stay sequential ("arbitrary"): the h/c carry depends on it.
        compiler_params=pltpu.CompilerParams(
            dimension_semantics=("arbitrary",)),
    )(xt, w_ih0, w_hh0, w_cat, b, dw, db)

    return y[:T, :O][None]                           # (1, T, O)


def init_params(key, input_dim, hidden_dim, num_layers, output_dim):
    """Deterministic synthetic init (PyTorch-style U(-k, k), k=1/sqrt(H))."""
    H, L = hidden_dim, num_layers
    k = 1.0 / np.sqrt(H)
    Opad = _round_up(output_dim, 128)
    keys = jax.random.split(key, 3 * L + 2)

    w_ih0 = jax.random.uniform(keys[0], (input_dim, 4 * H), jnp.float32, -k, k)
    w_ih_rest, w_hh, b = [], [], []
    for l in range(L):
        if l > 0:
            w_ih_rest.append(jax.random.uniform(keys[3 * l], (H, 4 * H),
                                                jnp.float32, -k, k))
        w_hh.append(jax.random.uniform(keys[3 * l + 1], (H, 4 * H),
                                       jnp.float32, -k, k))
        # b_ih + b_hh combined into a single bias (consistent with reference).
        b.append(jax.random.uniform(keys[3 * l + 2], (1, 4 * H),
                                    jnp.float32, -k, k))

    # Fused per-layer (l>=1) weights: rows = [W_ih_l ; W_hh_l] -> (2H, 4H).
    if L > 1:
        w_cat = jnp.stack([jnp.concatenate([w_ih_rest[l], w_hh[l + 1]], axis=0)
                           for l in range(L - 1)])
    else:
        w_cat = jnp.zeros((1, 2 * H, 4 * H), jnp.float32)      # dummy, unused

    dw = jnp.zeros((H, Opad), jnp.float32).at[:, :output_dim].set(
        jax.random.uniform(keys[-2], (H, output_dim), jnp.float32, -k, k))
    db = jnp.zeros((1, Opad), jnp.float32).at[:, :output_dim].set(
        jax.random.uniform(keys[-1], (1, output_dim), jnp.float32, -k, k))

    return {
        "w_ih0": w_ih0,                      # (Din, 4H)
        "w_hh0": w_hh[0],                    # (H, 4H)
        "w_cat": w_cat,                      # (max(L-1,1), 2H, 4H) fused
        "b": jnp.stack(b),                   # (L, 1, 4H)
        "dw": dw,                            # (H, Opad), cols >= O are zero
        "db": db,                            # (1, Opad), cols >= O are zero
        "output_dim": output_dim,
        # Unfused copies kept only for the pure-JAX reference.
        "w_ih_rest": (jnp.stack(w_ih_rest) if L > 1
                      else jnp.zeros((1, H, 4 * H), jnp.float32)),
        "w_hh": jnp.stack(w_hh),
    }


def reference_forward(x, params):
    """Pure-JAX reference (same math, no Pallas)."""
    w_ih0, w_ih_rest, w_hh, b, dw, db = (params["w_ih0"], params["w_ih_rest"],
                                         params["w_hh"], params["b"],
                                         params["dw"], params["db"])
    O = params["output_dim"]
    B, T, _ = x.shape
    L, H, _ = w_hh.shape
    h = [jnp.zeros((B, H), jnp.float32) for _ in range(L)]
    c = [jnp.zeros((B, H), jnp.float32) for _ in range(L)]
    ys = []
    for t in range(T):
        inp = x[:, t, :]
        for l in range(L):
            w_in = w_ih0 if l == 0 else w_ih_rest[l - 1]
            gates = inp @ w_in + h[l] @ w_hh[l] + b[l]
            i = jax.nn.sigmoid(gates[:, 0 * H:1 * H])
            f = jax.nn.sigmoid(gates[:, 1 * H:2 * H])
            g = jnp.tanh(gates[:, 2 * H:3 * H])
            o = jax.nn.sigmoid(gates[:, 3 * H:4 * H])
            c[l] = f * c[l] + i * g
            h[l] = o * jnp.tanh(c[l])
            inp = h[l]
        ys.append(h[-1] @ dw[:, :O] + db[:, :O])
    return jnp.stack(ys, axis=1)             # (B, T, O)


if __name__ == "__main__":
    input_dim, hidden_dim, num_layers, output_dim = 16, 32, 2, 8
    batch_size, seq_len = 1, 8               # module fixes batch_size = 1

    key = jax.random.PRNGKey(0)
    pkey, xkey, xkey2, xkey3 = jax.random.split(key, 4)
    params = init_params(pkey, input_dim, hidden_dim, num_layers, output_dim)

    # Test 1: short sequence (single time block, short steady-state loop).
    x = jax.random.normal(xkey, (batch_size, seq_len, input_dim), jnp.float32)
    y = jax.block_until_ready(lstm_dense_forward(x, params))
    y_ref = jax.block_until_ready(reference_forward(x, params))
    assert y.shape == (batch_size, seq_len, output_dim)
    np.testing.assert_allclose(np.asarray(y), np.asarray(y_ref),
                               rtol=5e-3, atol=5e-3)

    # Test 2: length not a multiple of 8 (exercises T padding inside a block).
    seq_len2 = 20
    x2 = jax.random.normal(xkey2, (batch_size, seq_len2, input_dim), jnp.float32)
    y2 = jax.block_until_ready(lstm_dense_forward(x2, params))
    y2_ref = jax.block_until_ready(reference_forward(x2, params))
    assert y2.shape == (batch_size, seq_len2, output_dim)
    np.testing.assert_allclose(np.asarray(y2), np.asarray(y2_ref),
                               rtol=5e-3, atol=5e-3)

    # Test 3: multiple time blocks (exercises the h/c carry across the
    # sequential grid axis plus padded tail in the last block).
    seq_len3 = 40
    x3 = jax.random.normal(xkey3, (batch_size, seq_len3, input_dim), jnp.float32)
    y3 = jax.block_until_ready(lstm_dense_forward(x3, params, time_block=16))
    y3_ref = jax.block_until_ready(reference_forward(x3, params))
    assert y3.shape == (batch_size, seq_len3, output_dim)
    np.testing.assert_allclose(np.asarray(y3), np.asarray(y3_ref),
                               rtol=5e-3, atol=5e-3)

    print("KERNEL_OK")
</pallas_src>

<mosaic_0001>
module attributes {stable_mosaic.version = 11 : i64} {
  func.func @_lstm_dense_kernel(%arg0: i32, %arg1: memref<8x16xf32, #tpu.memory_space<vmem>>, %arg2: memref<16x128xf32, #tpu.memory_space<vmem>>, %arg3: memref<32x128xf32, #tpu.memory_space<vmem>>, %arg4: memref<1x64x128xf32, #tpu.memory_space<vmem>>, %arg5: memref<2x1x128xf32, #tpu.memory_space<vmem>>, %arg6: memref<32x128xf32, #tpu.memory_space<vmem>>, %arg7: memref<1x128xf32, #tpu.memory_space<vmem>>, %arg8: memref<8x128xf32, #tpu.memory_space<vmem>>, %arg9: memref<2x1x32xf32, #tpu.memory_space<vmem>>, %arg10: memref<2x1x32xf32, #tpu.memory_space<vmem>>, %arg11: memref<8x128xf32, #tpu.memory_space<vmem>>, %arg12: memref<8x32xf32, #tpu.memory_space<vmem>>) attributes {dimension_semantics = [#tpu.dimension_semantics<arbitrary>], iteration_bounds = array<i64: 1>, scalar_prefetch = 0 : i64, scratch_operands = 4 : i64, tpu.core_type = #tpu.core_type<tc>, window_params = [{transform_indices = @transform_0, window_bounds = array<i64: 8, 16>}, {pipeline_mode = #tpu.pipeline_mode<synchronous>, transform_indices = @transform_1, window_bounds = array<i64: 16, 128>}, {pipeline_mode = #tpu.pipeline_mode<synchronous>, transform_indices = @transform_2, window_bounds = array<i64: 32, 128>}, {pipeline_mode = #tpu.pipeline_mode<synchronous>, transform_indices = @transform_3, window_bounds = array<i64: 1, 64, 128>}, {pipeline_mode = #tpu.pipeline_mode<synchronous>, transform_indices = @transform_4, window_bounds = array<i64: 2, 1, 128>}, {pipeline_mode = #tpu.pipeline_mode<synchronous>, transform_indices = @transform_5, window_bounds = array<i64: 32, 128>}, {pipeline_mode = #tpu.pipeline_mode<synchronous>, transform_indices = @transform_6, window_bounds = array<i64: 1, 128>}, {transform_indices = @transform_7, window_bounds = array<i64: 8, 128>}]} {
    %c0_i32 = arith.constant 0 : i32
    %0 = arith.cmpi eq, %arg0, %c0_i32 : i32
    %1 = arith.extui %0 : i1 to i32
    %c0_i32_0 = arith.constant 0 : i32
    %2 = arith.cmpi ne, %1, %c0_i32_0 : i32
    scf.if %2 {
      %cst_277 = arith.constant 0.000000e+00 : f32
      %502 = vector.broadcast %cst_277 : f32 to vector<2x1x32xf32>
      %c0_278 = arith.constant 0 : index
      %c0_279 = arith.constant 0 : index
      %c0_280 = arith.constant 0 : index
      %503 = vector.load %arg9[%c0_278, %c0_279, %c0_280] : memref<2x1x32xf32, #tpu.memory_space<vmem>>, vector<2x1x32xf32>
      tpu.vector_store %arg9[%c0_278, %c0_279, %c0_280], %502 {strides = array<i32>} : memref<2x1x32xf32, #tpu.memory_space<vmem>>, vector<2x1x32xf32>,
      %cst_281 = arith.constant 0.000000e+00 : f32
      %504 = vector.broadcast %cst_281 : f32 to vector<2x1x32xf32>
      %c0_282 = arith.constant 0 : index
      %c0_283 = arith.constant 0 : index
      %c0_284 = arith.constant 0 : index
      %505 = vector.load %arg10[%c0_282, %c0_283, %c0_284] : memref<2x1x32xf32, #tpu.memory_space<vmem>>, vector<2x1x32xf32>
      tpu.vector_store %arg10[%c0_282, %c0_283, %c0_284], %504 {strides = array<i32>} : memref<2x1x32xf32, #tpu.memory_space<vmem>>, vector<2x1x32xf32>,
    } else {
    }
    %c0 = arith.constant 0 : index
    %c0_1 = arith.constant 0 : index
    %3 = vector.load %arg1[%c0, %c0_1] : memref<8x16xf32, #tpu.memory_space<vmem>>, vector<8x16xf32>
    %c0_2 = arith.constant 0 : index
    %c0_3 = arith.constant 0 : index
    %4 = vector.load %arg2[%c0_2, %c0_3] : memref<16x128xf32, #tpu.memory_space<vmem>>, vector<16x128xf32>
    %cst = arith.constant dense<0.000000e+00> : vector<8x128xf32>
    %5 = tpu.matmul %3, %4, %cst {dimension_numbers = #tpu.dot_dimension_numbers<[1], [0], [0], [1], [0, 0, 1, 1], [], []>} : vector<8x16xf32>, vector<16x128xf32>, vector<8x128xf32> -> vector<8x128xf32>
    %c0_4 = arith.constant 0 : index
    %c0_5 = arith.constant 0 : index
    %c0_6 = arith.constant 0 : index
    %6 = vector.load %arg5[%c0_4, %c0_5, %c0_6] : memref<2x1x128xf32, #tpu.memory_space<vmem>>, vector<1x1x128xf32>
    %7 = vector.shape_cast %6 : vector<1x1x128xf32> to vector<1x128xf32>
    %8 = vector.broadcast %7 : vector<1x128xf32> to vector<8x128xf32>
    %9 = arith.addf %5, %8 : vector<8x128xf32>
    %c0_7 = arith.constant 0 : index
    %c0_8 = arith.constant 0 : index
    %10 = vector.load %arg11[%c0_7, %c0_8] : memref<8x128xf32, #tpu.memory_space<vmem>>, vector<8x128xf32>
    tpu.vector_store %arg11[%c0_7, %c0_8], %9 {strides = array<i32>} : memref<8x128xf32, #tpu.memory_space<vmem>>, vector<8x128xf32>,
    %c0_9 = arith.constant 0 : index
    %c0_10 = arith.constant 0 : index
    %11 = vector.load %arg3[%c0_9, %c0_10] : memref<32x128xf32, #tpu.memory_space<vmem>>, vector<32x128xf32>
    %c0_11 = arith.constant 0 : index
    %c0_12 = arith.constant 0 : index
    %c0_13 = arith.constant 0 : index
    %12 = vector.load %arg4[%c0_11, %c0_12, %c0_13] : memref<1x64x128xf32, #tpu.memory_space<vmem>>, vector<1x64x128xf32>
    %13 = vector.shape_cast %12 : vector<1x64x128xf32> to vector<64x128xf32>
    %c1 = arith.constant 1 : index
    %c0_14 = arith.constant 0 : index
    %c0_15 = arith.constant 0 : index
    %14 = vector.load %arg5[%c1, %c0_14, %c0_15] : memref<2x1x128xf32, #tpu.memory_space<vmem>>, vector<1x1x128xf32>
    %15 = vector.shape_cast %14 : vector<1x1x128xf32> to vector<1x128xf32>
    %c0_16 = arith.constant 0 : index
    %c0_17 = arith.constant 0 : index
    %c0_18 = arith.constant 0 : index
    %16 = vector.load %arg9[%c0_16, %c0_17, %c0_18] : memref<2x1x32xf32, #tpu.memory_space<vmem>>, vector<1x1x32xf32>
    %17 = vector.shape_cast %16 : vector<1x1x32xf32> to vector<1x32xf32>
    %c0_19 = arith.constant 0 : index
    %c0_20 = arith.constant 0 : index
    %c0_21 = arith.constant 0 : index
    %18 = vector.load %arg10[%c0_19, %c0_20, %c0_21] : memref<2x1x32xf32, #tpu.memory_space<vmem>>, vector<1x1x32xf32>
    %19 = vector.shape_cast %18 : vector<1x1x32xf32> to vector<1x32xf32>
    %c0_22 = arith.constant 0 : index
    %c0_23 = arith.constant 0 : index
    %20 = vector.load %arg11[%c0_22, %c0_23] : memref<8x128xf32, #tpu.memory_space<vmem>>, vector<1x128xf32>
    %cst_24 = arith.constant dense<0.000000e+00> : vector<1x128xf32>
    %21 = tpu.matmul %17, %11, %cst_24 {dimension_numbers = #tpu.dot_dimension_numbers<[1], [0], [0], [1], [0, 0, 1, 1], [], []>} : vector<1x32xf32>, vector<32x128xf32>, vector<1x128xf32> -> vector<1x128xf32>
    %22 = arith.addf %20, %21 : vector<1x128xf32>
    %23 = arith.negf %22 : vector<1x128xf32>
    %24 = math.exp %23 : vector<1x128xf32>
    %cst_25 = arith.constant 1.000000e+00 : f32
    %25 = vector.broadcast %cst_25 : f32 to vector<1x128xf32>
    %26 = arith.addf %25, %24 : vector<1x128xf32>
    %27 = arith.divf %25, %26 : vector<1x128xf32>
    %28 = vector.extract_strided_slice %22 {offsets = [0, 64], sizes = [1, 32], strides = [1, 1]} : vector<1x128xf32> to vector<1x32xf32>
    %29 = math.tanh %28 : vector<1x32xf32>
    %30 = vector.extract_strided_slice %27 {offsets = [0, 32], sizes = [1, 32], strides = [1, 1]} : vector<1x128xf32> to vector<1x32xf32>
    %31 = arith.mulf %30, %19 : vector<1x32xf32>
    %32 = vector.extract_strided_slice %27 {offsets = [0, 0], sizes = [1, 32], strides = [1, 1]} : vector<1x128xf32> to vector<1x32xf32>
    %33 = arith.mulf %32, %29 : vector<1x32xf32>
    %34 = arith.addf %31, %33 : vector<1x32xf32>
    %35 = vector.extract_strided_slice %27 {offsets = [0, 96], sizes = [1, 32], strides = [1, 1]} : vector<1x128xf32> to vector<1x32xf32>
    %36 = math.tanh %34 : vector<1x32xf32>
    %37 = arith.mulf %35, %36 : vector<1x32xf32>
    %c0_26 = arith.constant 0 : index
    %c0_27 = arith.constant 0 : index
    %c0_28 = arith.constant 0 : index
    %38 = vector.load %arg9[%c0_26, %c0_27, %c0_28] : memref<2x1x32xf32, #tpu.memory_space<vmem>>, vector<1x1x32xf32>
    %39 = vector.shape_cast %38 : vector<1x1x32xf32> to vector<1x32xf32>
    %40 = vector.shape_cast %37 : vector<1x32xf32> to vector<1x1x32xf32>
    tpu.vector_store %arg9[%c0_26, %c0_27, %c0_28], %40 {strides = array<i32>} : memref<2x1x32xf32, #tpu.memory_space<vmem>>, vector<1x1x32xf32>,
    %c0_29 = arith.constant 0 : index
    %c0_30 = arith.constant 0 : index
    %c0_31 = arith.constant 0 : index
    %41 = vector.load %arg10[%c0_29, %c0_30, %c0_31] : memref<2x1x32xf32, #tpu.memory_space<vmem>>, vector<1x1x32xf32>
    %42 = vector.shape_cast %41 : vector<1x1x32xf32> to vector<1x32xf32>
    %43 = vector.shape_cast %34 : vector<1x32xf32> to vector<1x1x32xf32>
    tpu.vector_store %arg10[%c0_29, %c0_30, %c0_31], %43 {strides = array<i32>} : memref<2x1x32xf32, #tpu.memory_space<vmem>>, vector<1x1x32xf32>,
    %c1_i32 = arith.constant 1 : i32
    %c0_32 = arith.constant 0 : index
    %c0_33 = arith.constant 0 : index
    %c0_34 = arith.constant 0 : index
    %44 = vector.load %arg9[%c0_32, %c0_33, %c0_34] : memref<2x1x32xf32, #tpu.memory_space<vmem>>, vector<1x1x32xf32>
    %45 = vector.shape_cast %44 : vector<1x1x32xf32> to vector<1x32xf32>
    %c1_35 = arith.constant 1 : index
    %c0_36 = arith.constant 0 : index
    %c0_37 = arith.constant 0 : index
    %46 = vector.load %arg9[%c1_35, %c0_36, %c0_37] : memref<2x1x32xf32, #tpu.memory_space<vmem>>, vector<1x1x32xf32>
    %47 = vector.shape_cast %46 : vector<1x1x32xf32> to vector<1x32xf32>
    %c0_38 = arith.constant 0 : index
    %c0_39 = arith.constant 0 : index
    %c0_40 = arith.constant 0 : index
    %48 = vector.load %arg10[%c0_38, %c0_39, %c0_40] : memref<2x1x32xf32, #tpu.memory_space<vmem>>, vector<1x1x32xf32>
    %49 = vector.shape_cast %48 : vector<1x1x32xf32> to vector<1x32xf32>
    %c1_41 = arith.constant 1 : index
    %c0_42 = arith.constant 0 : index
    %c0_43 = arith.constant 0 : index
    %50 = vector.load %arg10[%c1_41, %c0_42, %c0_43] : memref<2x1x32xf32, #tpu.memory_space<vmem>>, vector<1x1x32xf32>
    %51 = vector.shape_cast %50 : vector<1x1x32xf32> to vector<1x32xf32>
    %52 = arith.index_cast %c1_i32 : i32 to index
    %c0_44 = arith.constant 0 : index
    %53 = vector.load %arg11[%52, %c0_44] : memref<8x128xf32, #tpu.memory_space<vmem>>, vector<1x128xf32>
    %cst_45 = arith.constant dense<0.000000e+00> : vector<1x128xf32>
    %54 = tpu.matmul %45, %11, %cst_45 {dimension_numbers = #tpu.dot_dimension_numbers<[1], [0], [0], [1], [0, 0, 1, 1], [], []>} : vector<1x32xf32>, vector<32x128xf32>, vector<1x128xf32> -> vector<1x128xf32>
    %55 = arith.addf %53, %54 : vector<1x128xf32>
    %56 = tpu.concatenate %45, %47 in 1 : vector<1x32xf32>, vector<1x32xf32> -> vector<1x64xf32>
    %cst_46 = arith.constant dense<0.000000e+00> : vector<1x128xf32>
    %57 = tpu.matmul %56, %13, %cst_46 {dimension_numbers = #tpu.dot_dimension_numbers<[1], [0], [0], [1], [0, 0, 1, 1], [], []>} : vector<1x64xf32>, vector<64x128xf32>, vector<1x128xf32> -> vector<1x128xf32>
    %58 = arith.addf %57, %15 : vector<1x128xf32>
    %59 = arith.negf %55 : vector<1x128xf32>
    %60 = math.exp %59 : vector<1x128xf32>
    %cst_47 = arith.constant 1.000000e+00 : f32
    %61 = vector.broadcast %cst_47 : f32 to vector<1x128xf32>
    %62 = arith.addf %61, %60 : vector<1x128xf32>
    %63 = arith.divf %61, %62 : vector<1x128xf32>
    %64 = vector.extract_strided_slice %55 {offsets = [0, 64], sizes = [1, 32], strides = [1, 1]} : vector<1x128xf32> to vector<1x32xf32>
    %65 = math.tanh %64 : vector<1x32xf32>
    %66 = vector.extract_strided_slice %63 {offsets = [0, 32], sizes = [1, 32], strides = [1, 1]} : vector<1x128xf32> to vector<1x32xf32>
    %67 = arith.mulf %66, %49 : vector<1x32xf32>
    %68 = vector.extract_strided_slice %63 {offsets = [0, 0], sizes = [1, 32], strides = [1, 1]} : vector<1x128xf32> to vector<1x32xf32>
    %69 = arith.mulf %68, %65 : vector<1x32xf32>
    %70 = arith.addf %67, %69 : vector<1x32xf32>
    %71 = vector.extract_strided_slice %63 {offsets = [0, 96], sizes = [1, 32], strides = [1, 1]} : vector<1x128xf32> to vector<1x32xf32>
    %72 = math.tanh %70 : vector<1x32xf32>
    %73 = arith.mulf %71, %72 : vector<1x32xf32>
    %c0_48 = arith.constant 0 : index
    %c0_49 = arith.constant 0 : index
    %c0_50 = arith.constant 0 : index
    %74 = vector.load %arg9[%c0_48, %c0_49, %c0_50] : memref<2x1x32xf32, #tpu.memory_space<vmem>>, vector<1x1x32xf32>
    %75 = vector.shape_cast %74 : vector<1x1x32xf32> to vector<1x32xf32>
    %76 = vector.shape_cast %73 : vector<1x32xf32> to vector<1x1x32xf32>
    tpu.vector_store %arg9[%c0_48, %c0_49, %c0_50], %76 {strides = array<i32>} : memref<2x1x32xf32, #tpu.memory_space<vmem>>, vector<1x1x32xf32>,
    %c0_51 = arith.constant 0 : index
    %c0_52 = arith.constant 0 : index
    %c0_53 = arith.constant 0 : index
    %77 = vector.load %arg10[%c0_51, %c0_52, %c0_53] : memref<2x1x32xf32, #tpu.memory_space<vmem>>, vector<1x1x32xf32>
    %78 = vector.shape_cast %77 : vector<1x1x32xf32> to vector<1x32xf32>
    %79 = vector.shape_cast %70 : vector<1x32xf32> to vector<1x1x32xf32>
    tpu.vector_store %arg10[%c0_51, %c0_52, %c0_53], %79 {strides = array<i32>} : memref<2x1x32xf32, #tpu.memory_space<vmem>>, vector<1x1x32xf32>,
    %80 = arith.negf %58 : vector<1x128xf32>
    %81 = math.exp %80 : vector<1x128xf32>
    %cst_54 = arith.constant 1.000000e+00 : f32
    %82 = vector.broadcast %cst_54 : f32 to vector<1x128xf32>
    %83 = arith.addf %82, %81 : vector<1x128xf32>
    %84 = arith.divf %82, %83 : vector<1x128xf32>
    %85 = vector.extract_strided_slice %58 {offsets = [0, 64], sizes = [1, 32], strides = [1, 1]} : vector<1x128xf32> to vector<1x32xf32>
    %86 = math.tanh %85 : vector<1x32xf32>
    %87 = vector.extract_strided_slice %84 {offsets = [0, 32], sizes = [1, 32], strides = [1, 1]} : vector<1x128xf32> to vector<1x32xf32>
    %88 = arith.mulf %87, %51 : vector<1x32xf32>
    %89 = vector.extract_strided_slice %84 {offsets = [0, 0], sizes = [1, 32], strides = [1, 1]} : vector<1x128xf32> to vector<1x32xf32>
    %90 = arith.mulf %89, %86 : vector<1x32xf32>
    %91 = arith.addf %88, %90 : vector<1x32xf32>
    %92 = vector.extract_strided_slice %84 {offsets = [0, 96], sizes = [1, 32], strides = [1, 1]} : vector<1x128xf32> to vector<1x32xf32>
    %93 = math.tanh %91 : vector<1x32xf32>
    %94 = arith.mulf %92, %93 : vector<1x32xf32>
    %c1_55 = arith.constant 1 : index
    %c0_56 = arith.constant 0 : index
    %c0_57 = arith.constant 0 : index
    %95 = vector.load %arg9[%c1_55, %c0_56, %c0_57] : memref<2x1x32xf32, #tpu.memory_space<vmem>>, vector<1x1x32xf32>
    %96 = vector.shape_cast %95 : vector<1x1x32xf32> to vector<1x32xf32>
    %97 = vector.shape_cast %94 : vector<1x32xf32> to vector<1x1x32xf32>
    tpu.vector_store %arg9[%c1_55, %c0_56, %c0_57], %97 {strides = array<i32>} : memref<2x1x32xf32, #tpu.memory_space<vmem>>, vector<1x1x32xf32>,
    %c1_58 = arith.constant 1 : index
    %c0_59 = arith.constant 0 : index
    %c0_60 = arith.constant 0 : index
    %98 = vector.load %arg10[%c1_58, %c0_59, %c0_60] : memref<2x1x32xf32, #tpu.memory_space<vmem>>, vector<1x1x32xf32>
    %99 = vector.shape_cast %98 : vector<1x1x32xf32> to vector<1x32xf32>
    %100 = vector.shape_cast %91 : vector<1x32xf32> to vector<1x1x32xf32>
    tpu.vector_store %arg10[%c1_58, %c0_59, %c0_60], %100 {strides = array<i32>} : memref<2x1x32xf32, #tpu.memory_space<vmem>>, vector<1x1x32xf32>,
    %c1_i32_61 = arith.constant 1 : i32
    %101 = arith.subi %c1_i32, %c1_i32_61 : i32
    %102 = arith.index_cast %101 : i32 to index
    %c0_62 = arith.constant 0 : index
    %103 = vector.load %arg12[%102, %c0_62] : memref<8x32xf32, #tpu.memory_space<vmem>>, vector<1x32xf32>
    tpu.vector_store %arg12[%102, %c0_62], %94 {strides = array<i32>} : memref<8x32xf32, #tpu.memory_space<vmem>>, vector<1x32xf32>,
    %c2_i32 = arith.constant 2 : i32
    %c0_63 = arith.constant 0 : index
    %c0_64 = arith.constant 0 : index
    %c0_65 = arith.constant 0 : index
    %104 = vector.load %arg9[%c0_63, %c0_64, %c0_65] : memref<2x1x32xf32, #tpu.memory_space<vmem>>, vector<1x1x32xf32>
    %105 = vector.shape_cast %104 : vector<1x1x32xf32> to vector<1x32xf32>
    %c1_66 = arith.constant 1 : index
    %c0_67 = arith.constant 0 : index
    %c0_68 = arith.constant 0 : index
    %106 = vector.load %arg9[%c1_66, %c0_67, %c0_68] : memref<2x1x32xf32, #tpu.memory_space<vmem>>, vector<1x1x32xf32>
    %107 = vector.shape_cast %106 : vector<1x1x32xf32> to vector<1x32xf32>
    %c0_69 = arith.constant 0 : index
    %c0_70 = arith.constant 0 : index
    %c0_71 = arith.constant 0 : index
    %108 = vector.load %arg10[%c0_69, %c0_70, %c0_71] : memref<2x1x32xf32, #tpu.memory_space<vmem>>, vector<1x1x32xf32>
    %109 = vector.shape_cast %108 : vector<1x1x32xf32> to vector<1x32xf32>
    %c1_72 = arith.constant 1 : index
    %c0_73 = arith.constant 0 : index
    %c0_74 = arith.constant 0 : index
    %110 = vector.load %arg10[%c1_72, %c0_73, %c0_74] : memref<2x1x32xf32, #tpu.memory_space<vmem>>, vector<1x1x32xf32>
    %111 = vector.shape_cast %110 : vector<1x1x32xf32> to vector<1x32xf32>
    %112 = arith.index_cast %c2_i32 : i32 to index
    %c0_75 = arith.constant 0 : index
    %113 = vector.load %arg11[%112, %c0_75] : memref<8x128xf32, #tpu.memory_space<vmem>>, vector<1x128xf32>
    %cst_76 = arith.constant dense<0.000000e+00> : vector<1x128xf32>
    %114 = tpu.matmul %105, %11, %cst_76 {dimension_numbers = #tpu.dot_dimension_numbers<[1], [0], [0], [1], [0, 0, 1, 1], [], []>} : vector<1x32xf32>, vector<32x128xf32>, vector<1x128xf32> -> vector<1x128xf32>
    %115 = arith.addf %113, %114 : vector<1x128xf32>
    %116 = tpu.concatenate %105, %107 in 1 : vector<1x32xf32>, vector<1x32xf32> -> vector<1x64xf32>
    %cst_77 = arith.constant dense<0.000000e+00> : vector<1x128xf32>
    %117 = tpu.matmul %116, %13, %cst_77 {dimension_numbers = #tpu.dot_dimension_numbers<[1], [0], [0], [1], [0, 0, 1, 1], [], []>} : vector<1x64xf32>, vector<64x128xf32>, vector<1x128xf32> -> vector<1x128xf32>
    %118 = arith.addf %117, %15 : vector<1x128xf32>
    %119 = arith.negf %115 : vector<1x128xf32>
    %120 = math.exp %119 : vector<1x128xf32>
    %cst_78 = arith.constant 1.000000e+00 : f32
    %121 = vector.broadcast %cst_78 : f32 to vector<1x128xf32>
    %122 = arith.addf %121, %120 : vector<1x128xf32>
    %123 = arith.divf %121, %122 : vector<1x128xf32>
    %124 = vector.extract_strided_slice %115 {offsets = [0, 64], sizes = [1, 32], strides = [1, 1]} : vector<1x128xf32> to vector<1x32xf32>
    %125 = math.tanh %124 : vector<1x32xf32>
    %126 = vector.extract_strided_slice %123 {offsets = [0, 32], sizes = [1, 32], strides = [1, 1]} : vector<1x128xf32> to vector<1x32xf32>
    %127 = arith.mulf %126, %109 : vector<1x32xf32>
    %128 = vector.extract_strided_slice %123 {offsets = [0, 0], sizes = [1, 32], strides = [1, 1]} : vector<1x128xf32> to vector<1x32xf32>
    %129 = arith.mulf %128, %125 : vector<1x32xf32>
    %130 = arith.addf %127, %129 : vector<1x32xf32>
    %131 = vector.extract_strided_slice %123 {offsets = [0, 96], sizes = [1, 32], strides = [1, 1]} : vector<1x128xf32> to vector<1x32xf32>
    %132 = math.tanh %130 : vector<1x32xf32>
    %133 = arith.mulf %131, %132 : vector<1x32xf32>
    %c0_79 = arith.constant 0 : index
    %c0_80 = arith.constant 0 : index
    %c0_81 = arith.constant 0 : index
    %134 = vector.load %arg9[%c0_79, %c0_80, %c0_81] : memref<2x1x32xf32, #tpu.memory_space<vmem>>, vector<1x1x32xf32>
    %135 = vector.shape_cast %134 : vector<1x1x32xf32> to vector<1x32xf32>
    %136 = vector.shape_cast %133 : vector<1x32xf32> to vector<1x1x32xf32>
    tpu.vector_store %arg9[%c0_79, %c0_80, %c0_81], %136 {strides = array<i32>} : memref<2x1x32xf32, #tpu.memory_space<vmem>>, vector<1x1x32xf32>,
    %c0_82 = arith.constant 0 : index
    %c0_83 = arith.constant 0 : index
    %c0_84 = arith.constant 0 : index
    %137 = vector.load %arg10[%c0_82, %c0_83, %c0_84] : memref<2x1x32xf32, #tpu.memory_space<vmem>>, vector<1x1x32xf32>
    %138 = vector.shape_cast %137 : vector<1x1x32xf32> to vector<1x32xf32>
    %139 = vector.shape_cast %130 : vector<1x32xf32> to vector<1x1x32xf32>
    tpu.vector_store %arg10[%c0_82, %c0_83, %c0_84], %139 {strides = array<i32>} : memref<2x1x32xf32, #tpu.memory_space<vmem>>, vector<1x1x32xf32>,
    %140 = arith.negf %118 : vector<1x128xf32>
    %141 = math.exp %140 : vector<1x128xf32>
    %cst_85 = arith.constant 1.000000e+00 : f32
    %142 = vector.broadcast %cst_85 : f32 to vector<1x128xf32>
    %143 = arith.addf %142, %141 : vector<1x128xf32>
    %144 = arith.divf %142, %143 : vector<1x128xf32>
    %145 = vector.extract_strided_slice %118 {offsets = [0, 64], sizes = [1, 32], strides = [1, 1]} : vector<1x128xf32> to vector<1x32xf32>
    %146 = math.tanh %145 : vector<1x32xf32>
    %147 = vector.extract_strided_slice %144 {offsets = [0, 32], sizes = [1, 32], strides = [1, 1]} : vector<1x128xf32> to vector<1x32xf32>
    %148 = arith.mulf %147, %111 : vector<1x32xf32>
    %149 = vector.extract_strided_slice %144 {offsets = [0, 0], sizes = [1, 32], strides = [1, 1]} : vector<1x128xf32> to vector<1x32xf32>
    %150 = arith.mulf %149, %146 : vector<1x32xf32>
    %151 = arith.addf %148, %150 : vector<1x32xf32>
    %152 = vector.extract_strided_slice %144 {offsets = [0, 96], sizes = [1, 32], strides = [1, 1]} : vector<1x128xf32> to vector<1x32xf32>
    %153 = math.tanh %151 : vector<1x32xf32>
    %154 = arith.mulf %152, %153 : vector<1x32xf32>
    %c1_86 = arith.constant 1 : index
    %c0_87 = arith.constant 0 : index
    %c0_88 = arith.constant 0 : index
    %155 = vector.load %arg9[%c1_86, %c0_87, %c0_88] : memref<2x1x32xf32, #tpu.memory_space<vmem>>, vector<1x1x32xf32>
    %156 = vector.shape_cast %155 : vector<1x1x32xf32> to vector<1x32xf32>
    %157 = vector.shape_cast %154 : vector<1x32xf32> to vector<1x1x32xf32>
    tpu.vector_store %arg9[%c1_86, %c0_87, %c0_88], %157 {strides = array<i32>} : memref<2x1x32xf32, #tpu.memory_space<vmem>>, vector<1x1x32xf32>,
    %c1_89 = arith.constant 1 : index
    %c0_90 = arith.constant 0 : index
    %c0_91 = arith.constant 0 : index
    %158 = vector.load %arg10[%c1_89, %c0_90, %c0_91] : memref<2x1x32xf32, #tpu.memory_space<vmem>>, vector<1x1x32xf32>
    %159 = vector.shape_cast %158 : vector<1x1x32xf32> to vector<1x32xf32>
    %160 = vector.shape_cast %151 : vector<1x32xf32> to vector<1x1x32xf32>
    tpu.vector_store %arg10[%c1_89, %c0_90, %c0_91], %160 {strides = array<i32>} : memref<2x1x32xf32, #tpu.memory_space<vmem>>, vector<1x1x32xf32>,
    %c1_i32_92 = arith.constant 1 : i32
    %161 = arith.subi %c2_i32, %c1_i32_92 : i32
    %162 = arith.index_cast %161 : i32 to index
    %c0_93 = arith.constant 0 : index
    %163 = vector.load %arg12[%162, %c0_93] : memref<8x32xf32, #tpu.memory_space<vmem>>, vector<1x32xf32>
    tpu.vector_store %arg12[%162, %c0_93], %154 {strides = array<i32>} : memref<8x32xf32, #tpu.memory_space<vmem>>, vector<1x32xf32>,
    %c3_i32 = arith.constant 3 : i32
    %c0_94 = arith.constant 0 : index
    %c0_95 = arith.constant 0 : index
    %c0_96 = arith.constant 0 : index
    %164 = vector.load %arg9[%c0_94, %c0_95, %c0_96] : memref<2x1x32xf32, #tpu.memory_space<vmem>>, vector<1x1x32xf32>
    %165 = vector.shape_cast %164 : vector<1x1x32xf32> to vector<1x32xf32>
    %c1_97 = arith.constant 1 : index
    %c0_98 = arith.constant 0 : index
    %c0_99 = arith.constant 0 : index
    %166 = vector.load %arg9[%c1_97, %c0_98, %c0_99] : memref<2x1x32xf32, #tpu.memory_space<vmem>>, vector<1x1x32xf32>
    %167 = vector.shape_cast %166 : vector<1x1x32xf32> to vector<1x32xf32>
    %c0_100 = arith.constant 0 : index
    %c0_101 = arith.constant 0 : index
    %c0_102 = arith.constant 0 : index
    %168 = vector.load %arg10[%c0_100, %c0_101, %c0_102] : memref<2x1x32xf32, #tpu.memory_space<vmem>>, vector<1x1x32xf32>
    %169 = vector.shape_cast %168 : vector<1x1x32xf32> to vector<1x32xf32>
    %c1_103 = arith.constant 1 : index
    %c0_104 = arith.constant 0 : index
    %c0_105 = arith.constant 0 : index
    %170 = vector.load %arg10[%c1_103, %c0_104, %c0_105] : memref<2x1x32xf32, #tpu.memory_space<vmem>>, vector<1x1x32xf32>
    %171 = vector.shape_cast %170 : vector<1x1x32xf32> to vector<1x32xf32>
    %172 = arith.index_cast %c3_i32 : i32 to index
    %c0_106 = arith.constant 0 : index
    %173 = vector.load %arg11[%172, %c0_106] : memref<8x128xf32, #tpu.memory_space<vmem>>, vector<1x128xf32>
    %cst_107 = arith.constant dense<0.000000e+00> : vector<1x128xf32>
    %174 = tpu.matmul %165, %11, %cst_107 {dimension_numbers = #tpu.dot_dimension_numbers<[1], [0], [0], [1], [0, 0, 1, 1], [], []>} : vector<1x32xf32>, vector<32x128xf32>, vector<1x128xf32> -> vector<1x128xf32>
    %175 = arith.addf %173, %174 : vector<1x128xf32>
    %176 = tpu.concatenate %165, %167 in 1 : vector<1x32xf32>, vector<1x32xf32> -> vector<1x64xf32>
    %cst_108 = arith.constant dense<0.000000e+00> : vector<1x128xf32>
    %177 = tpu.matmul %176, %13, %cst_108 {dimension_numbers = #tpu.dot_dimension_numbers<[1], [0], [0], [1], [0, 0, 1, 1], [], []>} : vector<1x64xf32>, vector<64x128xf32>, vector<1x128xf32> -> vector<1x128xf32>
    %178 = arith.addf %177, %15 : vector<1x128xf32>
    %179 = arith.negf %175 : vector<1x128xf32>
    %180 = math.exp %179 : vector<1x128xf32>
    %cst_109 = arith.constant 1.000000e+00 : f32
    %181 = vector.broadcast %cst_109 : f32 to vector<1x128xf32>
    %182 = arith.addf %181, %180 : vector<1x128xf32>
    %183 = arith.divf %181, %182 : vector<1x128xf32>
    %184 = vector.extract_strided_slice %175 {offsets = [0, 64], sizes = [1, 32], strides = [1, 1]} : vector<1x128xf32> to vector<1x32xf32>
    %185 = math.tanh %184 : vector<1x32xf32>
    %186 = vector.extract_strided_slice %183 {offsets = [0, 32], sizes = [1, 32], strides = [1, 1]} : vector<1x128xf32> to vector<1x32xf32>
    %187 = arith.mulf %186, %169 : vector<1x32xf32>
    %188 = vector.extract_strided_slice %183 {offsets = [0, 0], sizes = [1, 32], strides = [1, 1]} : vector<1x128xf32> to vector<1x32xf32>
    %189 = arith.mulf %188, %185 : vector<1x32xf32>
    %190 = arith.addf %187, %189 : vector<1x32xf32>
    %191 = vector.extract_strided_slice %183 {offsets = [0, 96], sizes = [1, 32], strides = [1, 1]} : vector<1x128xf32> to vector<1x32xf32>
    %192 = math.tanh %190 : vector<1x32xf32>
    %193 = arith.mulf %191, %192 : vector<1x32xf32>
    %c0_110 = arith.constant 0 : index
    %c0_111 = arith.constant 0 : index
    %c0_112 = arith.constant 0 : index
    %194 = vector.load %arg9[%c0_110, %c0_111, %c0_112] : memref<2x1x32xf32, #tpu.memory_space<vmem>>, vector<1x1x32xf32>
    %195 = vector.shape_cast %194 : vector<1x1x32xf32> to vector<1x32xf32>
    %196 = vector.shape_cast %193 : vector<1x32xf32> to vector<1x1x32xf32>
    tpu.vector_store %arg9[%c0_110, %c0_111, %c0_112], %196 {strides = array<i32>} : memref<2x1x32xf32, #tpu.memory_space<vmem>>, vector<1x1x32xf32>,
    %c0_113 = arith.constant 0 : index
    %c0_114 = arith.constant 0 : index
    %c0_115 = arith.constant 0 : index
    %197 = vector.load %arg10[%c0_113, %c0_114, %c0_115] : memref<2x1x32xf32, #tpu.memory_space<vmem>>, vector<1x1x32xf32>
    %198 = vector.shape_cast %197 : vector<1x1x32xf32> to vector<1x32xf32>
    %199 = vector.shape_cast %190 : vector<1x32xf32> to vector<1x1x32xf32>
    tpu.vector_store %arg10[%c0_113, %c0_114, %c0_115], %199 {strides = array<i32>} : memref<2x1x32xf32, #tpu.memory_space<vmem>>, vector<1x1x32xf32>,
    %200 = arith.negf %178 : vector<1x128xf32>
    %201 = math.exp %200 : vector<1x128xf32>
    %cst_116 = arith.constant 1.000000e+00 : f32
    %202 = vector.broadcast %cst_116 : f32 to vector<1x128xf32>
    %203 = arith.addf %202, %201 : vector<1x128xf32>
    %204 = arith.divf %202, %203 : vector<1x128xf32>
    %205 = vector.extract_strided_slice %178 {offsets = [0, 64], sizes = [1, 32], strides = [1, 1]} : vector<1x128xf32> to vector<1x32xf32>
    %206 = math.tanh %205 : vector<1x32xf32>
    %207 = vector.extract_strided_slice %204 {offsets = [0, 32], sizes = [1, 32], strides = [1, 1]} : vector<1x128xf32> to vector<1x32xf32>
    %208 = arith.mulf %207, %171 : vector<1x32xf32>
    %209 = vector.extract_strided_slice %204 {offsets = [0, 0], sizes = [1, 32], strides = [1, 1]} : vector<1x128xf32> to vector<1x32xf32>
    %210 = arith.mulf %209, %206 : vector<1x32xf32>
    %211 = arith.addf %208, %210 : vector<1x32xf32>
    %212 = vector.extract_strided_slice %204 {offsets = [0, 96], sizes = [1, 32], strides = [1, 1]} : vector<1x128xf32> to vector<1x32xf32>
    %213 = math.tanh %211 : vector<1x32xf32>
    %214 = arith.mulf %212, %213 : vector<1x32xf32>
    %c1_117 = arith.constant 1 : index
    %c0_118 = arith.constant 0 : index
    %c0_119 = arith.constant 0 : index
    %215 = vector.load %arg9[%c1_117, %c0_118, %c0_119] : memref<2x1x32xf32, #tpu.memory_space<vmem>>, vector<1x1x32xf32>
    %216 = vector.shape_cast %215 : vector<1x1x32xf32> to vector<1x32xf32>
    %217 = vector.shape_cast %214 : vector<1x32xf32> to vector<1x1x32xf32>
    tpu.vector_store %arg9[%c1_117, %c0_118, %c0_119], %217 {strides = array<i32>} : memref<2x1x32xf32, #tpu.memory_space<vmem>>, vector<1x1x32xf32>,
    %c1_120 = arith.constant 1 : index
    %c0_121 = arith.constant 0 : index
    %c0_122 = arith.constant 0 : index
    %218 = vector.load %arg10[%c1_120, %c0_121, %c0_122] : memref<2x1x32xf32, #tpu.memory_space<vmem>>, vector<1x1x32xf32>
    %219 = vector.shape_cast %218 : vector<1x1x32xf32> to vector<1x32xf32>
    %220 = vector.shape_cast %211 : vector<1x32xf32> to vector<1x1x32xf32>
    tpu.vector_store %arg10[%c1_120, %c0_121, %c0_122], %220 {strides = array<i32>} : memref<2x1x32xf32, #tpu.memory_space<vmem>>, vector<1x1x32xf32>,
    %c1_i32_123 = arith.constant 1 : i32
    %221 = arith.subi %c3_i32, %c1_i32_123 : i32
    %222 = arith.index_cast %221 : i32 to index
    %c0_124 = arith.constant 0 : index
    %223 = vector.load %arg12[%222, %c0_124] : memref<8x32xf32, #tpu.memory_space<vmem>>, vector<1x32xf32>
    tpu.vector_store %arg12[%222, %c0_124], %214 {strides = array<i32>} : memref<8x32xf32, #tpu.memory_space<vmem>>, vector<1x32xf32>,
    %c4_i32 = arith.constant 4 : i32
    %c0_125 = arith.constant 0 : index
    %c0_126 = arith.constant 0 : index
    %c0_127 = arith.constant 0 : index
    %224 = vector.load %arg9[%c0_125, %c0_126, %c0_127] : memref<2x1x32xf32, #tpu.memory_space<vmem>>, vector<1x1x32xf32>
    %225 = vector.shape_cast %224 : vector<1x1x32xf32> to vector<1x32xf32>
    %c1_128 = arith.constant 1 : index
    %c0_129 = arith.constant 0 : index
    %c0_130 = arith.constant 0 : index
    %226 = vector.load %arg9[%c1_128, %c0_129, %c0_130] : memref<2x1x32xf32, #tpu.memory_space<vmem>>, vector<1x1x32xf32>
    %227 = vector.shape_cast %226 : vector<1x1x32xf32> to vector<1x32xf32>
    %c0_131 = arith.constant 0 : index
    %c0_132 = arith.constant 0 : index
    %c0_133 = arith.constant 0 : index
    %228 = vector.load %arg10[%c0_131, %c0_132, %c0_133] : memref<2x1x32xf32, #tpu.memory_space<vmem>>, vector<1x1x32xf32>
    %229 = vector.shape_cast %228 : vector<1x1x32xf32> to vector<1x32xf32>
    %c1_134 = arith.constant 1 : index
    %c0_135 = arith.constant 0 : index
    %c0_136 = arith.constant 0 : index
    %230 = vector.load %arg10[%c1_134, %c0_135, %c0_136] : memref<2x1x32xf32, #tpu.memory_space<vmem>>, vector<1x1x32xf32>
    %231 = vector.shape_cast %230 : vector<1x1x32xf32> to vector<1x32xf32>
    %232 = arith.index_cast %c4_i32 : i32 to index
    %c0_137 = arith.constant 0 : index
    %233 = vector.load %arg11[%232, %c0_137] : memref<8x128xf32, #tpu.memory_space<vmem>>, vector<1x128xf32>
    %cst_138 = arith.constant dense<0.000000e+00> : vector<1x128xf32>
    %234 = tpu.matmul %225, %11, %cst_138 {dimension_numbers = #tpu.dot_dimension_numbers<[1], [0], [0], [1], [0, 0, 1, 1], [], []>} : vector<1x32xf32>, vector<32x128xf32>, vector<1x128xf32> -> vector<1x128xf32>
    %235 = arith.addf %233, %234 : vector<1x128xf32>
    %236 = tpu.concatenate %225, %227 in 1 : vector<1x32xf32>, vector<1x32xf32> -> vector<1x64xf32>
    %cst_139 = arith.constant dense<0.000000e+00> : vector<1x128xf32>
    %237 = tpu.matmul %236, %13, %cst_139 {dimension_numbers = #tpu.dot_dimension_numbers<[1], [0], [0], [1], [0, 0, 1, 1], [], []>} : vector<1x64xf32>, vector<64x128xf32>, vector<1x128xf32> -> vector<1x128xf32>
    %238 = arith.addf %237, %15 : vector<1x128xf32>
    %239 = arith.negf %235 : vector<1x128xf32>
    %240 = math.exp %239 : vector<1x128xf32>
    %cst_140 = arith.constant 1.000000e+00 : f32
    %241 = vector.broadcast %cst_140 : f32 to vector<1x128xf32>
    %242 = arith.addf %241, %240 : vector<1x128xf32>
    %243 = arith.divf %241, %242 : vector<1x128xf32>
    %244 = vector.extract_strided_slice %235 {offsets = [0, 64], sizes = [1, 32], strides = [1, 1]} : vector<1x128xf32> to vector<1x32xf32>
    %245 = math.tanh %244 : vector<1x32xf32>
    %246 = vector.extract_strided_slice %243 {offsets = [0, 32], sizes = [1, 32], strides = [1, 1]} : vector<1x128xf32> to vector<1x32xf32>
    %247 = arith.mulf %246, %229 : vector<1x32xf32>
    %248 = vector.extract_strided_slice %243 {offsets = [0, 0], sizes = [1, 32], strides = [1, 1]} : vector<1x128xf32> to vector<1x32xf32>
    %249 = arith.mulf %248, %245 : vector<1x32xf32>
    %250 = arith.addf %247, %249 : vector<1x32xf32>
    %251 = vector.extract_strided_slice %243 {offsets = [0, 96], sizes = [1, 32], strides = [1, 1]} : vector<1x128xf32> to vector<1x32xf32>
    %252 = math.tanh %250 : vector<1x32xf32>
    %253 = arith.mulf %251, %252 : vector<1x32xf32>
    %c0_141 = arith.constant 0 : index
    %c0_142 = arith.constant 0 : index
    %c0_143 = arith.constant 0 : index
    %254 = vector.load %arg9[%c0_141, %c0_142, %c0_143] : memref<2x1x32xf32, #tpu.memory_space<vmem>>, vector<1x1x32xf32>
    %255 = vector.shape_cast %254 : vector<1x1x32xf32> to vector<1x32xf32>
    %256 = vector.shape_cast %253 : vector<1x32xf32> to vector<1x1x32xf32>
    tpu.vector_store %arg9[%c0_141, %c0_142, %c0_143], %256 {strides = array<i32>} : memref<2x1x32xf32, #tpu.memory_space<vmem>>, vector<1x1x32xf32>,
    %c0_144 = arith.constant 0 : index
    %c0_145 = arith.constant 0 : index
    %c0_146 = arith.constant 0 : index
    %257 = vector.load %arg10[%c0_144, %c0_145, %c0_146] : memref<2x1x32xf32, #tpu.memory_space<vmem>>, vector<1x1x32xf32>
    %258 = vector.shape_cast %257 : vector<1x1x32xf32> to vector<1x32xf32>
    %259 = vector.shape_cast %250 : vector<1x32xf32> to vector<1x1x32xf32>
    tpu.vector_store %arg10[%c0_144, %c0_145, %c0_146], %259 {strides = array<i32>} : memref<2x1x32xf32, #tpu.memory_space<vmem>>, vector<1x1x32xf32>,
    %260 = arith.negf %238 : vector<1x128xf32>
    %261 = math.exp %260 : vector<1x128xf32>
    %cst_147 = arith.constant 1.000000e+00 : f32
    %262 = vector.broadcast %cst_147 : f32 to vector<1x128xf32>
    %263 = arith.addf %262, %261 : vector<1x128xf32>
    %264 = arith.divf %262, %263 : vector<1x128xf32>
    %265 = vector.extract_strided_slice %238 {offsets = [0, 64], sizes = [1, 32], strides = [1, 1]} : vector<1x128xf32> to vector<1x32xf32>
    %266 = math.tanh %265 : vector<1x32xf32>
    %267 = vector.extract_strided_slice %264 {offsets = [0, 32], sizes = [1, 32], strides = [1, 1]} : vector<1x128xf32> to vector<1x32xf32>
    %268 = arith.mulf %267, %231 : vector<1x32xf32>
    %269 = vector.extract_strided_slice %264 {offsets = [0, 0], sizes = [1, 32], strides = [1, 1]} : vector<1x128xf32> to vector<1x32xf32>
    %270 = arith.mulf %269, %266 : vector<1x32xf32>
    %271 = arith.addf %268, %270 : vector<1x32xf32>
    %272 = vector.extract_strided_slice %264 {offsets = [0, 96], sizes = [1, 32], strides = [1, 1]} : vector<1x128xf32> to vector<1x32xf32>
    %273 = math.tanh %271 : vector<1x32xf32>
    %274 = arith.mulf %272, %273 : vector<1x32xf32>
    %c1_148 = arith.constant 1 : index
    %c0_149 = arith.constant 0 : index
    %c0_150 = arith.constant 0 : index
    %275 = vector.load %arg9[%c1_148, %c0_149, %c0_150] : memref<2x1x32xf32, #tpu.memory_space<vmem>>, vector<1x1x32xf32>
    %276 = vector.shape_cast %275 : vector<1x1x32xf32> to vector<1x32xf32>
    %277 = vector.shape_cast %274 : vector<1x32xf32> to vector<1x1x32xf32>
    tpu.vector_store %arg9[%c1_148, %c0_149, %c0_150], %277 {strides = array<i32>} : memref<2x1x32xf32, #tpu.memory_space<vmem>>, vector<1x1x32xf32>,
    %c1_151 = arith.constant 1 : index
    %c0_152 = arith.constant 0 : index
    %c0_153 = arith.constant 0 : index
    %278 = vector.load %arg10[%c1_151, %c0_152, %c0_153] : memref<2x1x32xf32, #tpu.memory_space<vmem>>, vector<1x1x32xf32>
    %279 = vector.shape_cast %278 : vector<1x1x32xf32> to vector<1x32xf32>
    %280 = vector.shape_cast %271 : vector<1x32xf32> to vector<1x1x32xf32>
    tpu.vector_store %arg10[%c1_151, %c0_152, %c0_153], %280 {strides = array<i32>} : memref<2x1x32xf32, #tpu.memory_space<vmem>>, vector<1x1x32xf32>,
    %c1_i32_154 = arith.constant 1 : i32
    %281 = arith.subi %c4_i32, %c1_i32_154 : i32
    %282 = arith.index_cast %281 : i32 to index
    %c0_155 = arith.constant 0 : index
    %283 = vector.load %arg12[%282, %c0_155] : memref<8x32xf32, #tpu.memory_space<vmem>>, vector<1x32xf32>
    tpu.vector_store %arg12[%282, %c0_155], %274 {strides = array<i32>} : memref<8x32xf32, #tpu.memory_space<vmem>>, vector<1x32xf32>,
    %c5_i32 = arith.constant 5 : i32
    %c0_156 = arith.constant 0 : index
    %c0_157 = arith.constant 0 : index
    %c0_158 = arith.constant 0 : index
    %284 = vector.load %arg9[%c0_156, %c0_157, %c0_158] : memref<2x1x32xf32, #tpu.memory_space<vmem>>, vector<1x1x32xf32>
    %285 = vector.shape_cast %284 : vector<1x1x32xf32> to vector<1x32xf32>
    %c1_159 = arith.constant 1 : index
    %c0_160 = arith.constant 0 : index
    %c0_161 = arith.constant 0 : index
    %286 = vector.load %arg9[%c1_159, %c0_160, %c0_161] : memref<2x1x32xf32, #tpu.memory_space<vmem>>, vector<1x1x32xf32>
    %287 = vector.shape_cast %286 : vector<1x1x32xf32> to vector<1x32xf32>
    %c0_162 = arith.constant 0 : index
    %c0_163 = arith.constant 0 : index
    %c0_164 = arith.constant 0 : index
    %288 = vector.load %arg10[%c0_162, %c0_163, %c0_164] : memref<2x1x32xf32, #tpu.memory_space<vmem>>, vector<1x1x32xf32>
    %289 = vector.shape_cast %288 : vector<1x1x32xf32> to vector<1x32xf32>
    %c1_165 = arith.constant 1 : index
    %c0_166 = arith.constant 0 : index
    %c0_167 = arith.constant 0 : index
    %290 = vector.load %arg10[%c1_165, %c0_166, %c0_167] : memref<2x1x32xf32, #tpu.memory_space<vmem>>, vector<1x1x32xf32>
    %291 = vector.shape_cast %290 : vector<1x1x32xf32> to vector<1x32xf32>
    %292 = arith.index_cast %c5_i32 : i32 to index
    %c0_168 = arith.constant 0 : index
    %293 = vector.load %arg11[%292, %c0_168] : memref<8x128xf32, #tpu.memory_space<vmem>>, vector<1x128xf32>
    %cst_169 = arith.constant dense<0.000000e+00> : vector<1x128xf32>
    %294 = tpu.matmul %285, %11, %cst_169 {dimension_numbers = #tpu.dot_dimension_numbers<[1], [0], [0], [1], [0, 0, 1, 1], [], []>} : vector<1x32xf32>, vector<32x128xf32>, vector<1x128xf32> -> vector<1x128xf32>
    %295 = arith.addf %293, %294 : vector<1x128xf32>
    %296 = tpu.concatenate %285, %287 in 1 : vector<1x32xf32>, vector<1x32xf32> -> vector<1x64xf32>
    %cst_170 = arith.constant dense<0.000000e+00> : vector<1x128xf32>
    %297 = tpu.matmul %296, %13, %cst_170 {dimension_numbers = #tpu.dot_dimension_numbers<[1], [0], [0], [1], [0, 0, 1, 1], [], []>} : vector<1x64xf32>, vector<64x128xf32>, vector<1x128xf32> -> vector<1x128xf32>
    %298 = arith.addf %297, %15 : vector<1x128xf32>
    %299 = arith.negf %295 : vector<1x128xf32>
    %300 = math.exp %299 : vector<1x128xf32>
    %cst_171 = arith.constant 1.000000e+00 : f32
    %301 = vector.broadcast %cst_171 : f32 to vector<1x128xf32>
    %302 = arith.addf %301, %300 : vector<1x128xf32>
    %303 = arith.divf %301, %302 : vector<1x128xf32>
    %304 = vector.extract_strided_slice %295 {offsets = [0, 64], sizes = [1, 32], strides = [1, 1]} : vector<1x128xf32> to vector<1x32xf32>
    %305 = math.tanh %304 : vector<1x32xf32>
    %306 = vector.extract_strided_slice %303 {offsets = [0, 32], sizes = [1, 32], strides = [1, 1]} : vector<1x128xf32> to vector<1x32xf32>
    %307 = arith.mulf %306, %289 : vector<1x32xf32>
    %308 = vector.extract_strided_slice %303 {offsets = [0, 0], sizes = [1, 32], strides = [1, 1]} : vector<1x128xf32> to vector<1x32xf32>
    %309 = arith.mulf %308, %305 : vector<1x32xf32>
    %310 = arith.addf %307, %309 : vector<1x32xf32>
    %311 = vector.extract_strided_slice %303 {offsets = [0, 96], sizes = [1, 32], strides = [1, 1]} : vector<1x128xf32> to vector<1x32xf32>
    %312 = math.tanh %310 : vector<1x32xf32>
    %313 = arith.mulf %311, %312 : vector<1x32xf32>
    %c0_172 = arith.constant 0 : index
    %c0_173 = arith.constant 0 : index
    %c0_174 = arith.constant 0 : index
    %314 = vector.load %arg9[%c0_172, %c0_173, %c0_174] : memref<2x1x32xf32, #tpu.memory_space<vmem>>, vector<1x1x32xf32>
    %315 = vector.shape_cast %314 : vector<1x1x32xf32> to vector<1x32xf32>
    %316 = vector.shape_cast %313 : vector<1x32xf32> to vector<1x1x32xf32>
    tpu.vector_store %arg9[%c0_172, %c0_173, %c0_174], %316 {strides = array<i32>} : memref<2x1x32xf32, #tpu.memory_space<vmem>>, vector<1x1x32xf32>,
    %c0_175 = arith.constant 0 : index
    %c0_176 = arith.constant 0 : index
    %c0_177 = arith.constant 0 : index
    %317 = vector.load %arg10[%c0_175, %c0_176, %c0_177] : memref<2x1x32xf32, #tpu.memory_space<vmem>>, vector<1x1x32xf32>
    %318 = vector.shape_cast %317 : vector<1x1x32xf32> to vector<1x32xf32>
    %319 = vector.shape_cast %310 : vector<1x32xf32> to vector<1x1x32xf32>
    tpu.vector_store %arg10[%c0_175, %c0_176, %c0_177], %319 {strides = array<i32>} : memref<2x1x32xf32, #tpu.memory_space<vmem>>, vector<1x1x32xf32>,
    %320 = arith.negf %298 : vector<1x128xf32>
    %321 = math.exp %320 : vector<1x128xf32>
    %cst_178 = arith.constant 1.000000e+00 : f32
    %322 = vector.broadcast %cst_178 : f32 to vector<1x128xf32>
    %323 = arith.addf %322, %321 : vector<1x128xf32>
    %324 = arith.divf %322, %323 : vector<1x128xf32>
    %325 = vector.extract_strided_slice %298 {offsets = [0, 64], sizes = [1, 32], strides = [1, 1]} : vector<1x128xf32> to vector<1x32xf32>
    %326 = math.tanh %325 : vector<1x32xf32>
    %327 = vector.extract_strided_slice %324 {offsets = [0, 32], sizes = [1, 32], strides = [1, 1]} : vector<1x128xf32> to vector<1x32xf32>
    %328 = arith.mulf %327, %291 : vector<1x32xf32>
    %329 = vector.extract_strided_slice %324 {offsets = [0, 0], sizes = [1, 32], strides = [1, 1]} : vector<1x128xf32> to vector<1x32xf32>
    %330 = arith.mulf %329, %326 : vector<1x32xf32>
    %331 = arith.addf %328, %330 : vector<1x32xf32>
    %332 = vector.extract_strided_slice %324 {offsets = [0, 96], sizes = [1, 32], strides = [1, 1]} : vector<1x128xf32> to vector<1x32xf32>
    %333 = math.tanh %331 : vector<1x32xf32>
    %334 = arith.mulf %332, %333 : vector<1x32xf32>
    %c1_179 = arith.constant 1 : index
    %c0_180 = arith.constant 0 : index
    %c0_181 = arith.constant 0 : index
    %335 = vector.load %arg9[%c1_179, %c0_180, %c0_181] : memref<2x1x32xf32, #tpu.memory_space<vmem>>, vector<1x1x32xf32>
    %336 = vector.shape_cast %335 : vector<1x1x32xf32> to vector<1x32xf32>
    %337 = vector.shape_cast %334 : vector<1x32xf32> to vector<1x1x32xf32>
    tpu.vector_store %arg9[%c1_179, %c0_180, %c0_181], %337 {strides = array<i32>} : memref<2x1x32xf32, #tpu.memory_space<vmem>>, vector<1x1x32xf32>,
    %c1_182 = arith.constant 1 : index
    %c0_183 = arith.constant 0 : index
    %c0_184 = arith.constant 0 : index
    %338 = vector.load %arg10[%c1_182, %c0_183, %c0_184] : memref<2x1x32xf32, #tpu.memory_space<vmem>>, vector<1x1x32xf32>
    %339 = vector.shape_cast %338 : vector<1x1x32xf32> to vector<1x32xf32>
    %340 = vector.shape_cast %331 : vector<1x32xf32> to vector<1x1x32xf32>
    tpu.vector_store %arg10[%c1_182, %c0_183, %c0_184], %340 {strides = array<i32>} : memref<2x1x32xf32, #tpu.memory_space<vmem>>, vector<1x1x32xf32>,
    %c1_i32_185 = arith.constant 1 : i32
    %341 = arith.subi %c5_i32, %c1_i32_185 : i32
    %342 = arith.index_cast %341 : i32 to index
    %c0_186 = arith.constant 0 : index
    %343 = vector.load %arg12[%342, %c0_186] : memref<8x32xf32, #tpu.memory_space<vmem>>, vector<1x32xf32>
    tpu.vector_store %arg12[%342, %c0_186], %334 {strides = array<i32>} : memref<8x32xf32, #tpu.memory_space<vmem>>, vector<1x32xf32>,
    %c6_i32 = arith.constant 6 : i32
    %c0_187 = arith.constant 0 : index
    %c0_188 = arith.constant 0 : index
    %c0_189 = arith.constant 0 : index
    %344 = vector.load %arg9[%c0_187, %c0_188, %c0_189] : memref<2x1x32xf32, #tpu.memory_space<vmem>>, vector<1x1x32xf32>
    %345 = vector.shape_cast %344 : vector<1x1x32xf32> to vector<1x32xf32>
    %c1_190 = arith.constant 1 : index
    %c0_191 = arith.constant 0 : index
    %c0_192 = arith.constant 0 : index
    %346 = vector.load %arg9[%c1_190, %c0_191, %c0_192] : memref<2x1x32xf32, #tpu.memory_space<vmem>>, vector<1x1x32xf32>
    %347 = vector.shape_cast %346 : vector<1x1x32xf32> to vector<1x32xf32>
    %c0_193 = arith.constant 0 : index
    %c0_194 = arith.constant 0 : index
    %c0_195 = arith.constant 0 : index
    %348 = vector.load %arg10[%c0_193, %c0_194, %c0_195] : memref<2x1x32xf32, #tpu.memory_space<vmem>>, vector<1x1x32xf32>
    %349 = vector.shape_cast %348 : vector<1x1x32xf32> to vector<1x32xf32>
    %c1_196 = arith.constant 1 : index
    %c0_197 = arith.constant 0 : index
    %c0_198 = arith.constant 0 : index
    %350 = vector.load %arg10[%c1_196, %c0_197, %c0_198] : memref<2x1x32xf32, #tpu.memory_space<vmem>>, vector<1x1x32xf32>
    %351 = vector.shape_cast %350 : vector<1x1x32xf32> to vector<1x32xf32>
    %352 = arith.index_cast %c6_i32 : i32 to index
    %c0_199 = arith.constant 0 : index
    %353 = vector.load %arg11[%352, %c0_199] : memref<8x128xf32, #tpu.memory_space<vmem>>, vector<1x128xf32>
    %cst_200 = arith.constant dense<0.000000e+00> : vector<1x128xf32>
    %354 = tpu.matmul %345, %11, %cst_200 {dimension_numbers = #tpu.dot_dimension_numbers<[1], [0], [0], [1], [0, 0, 1, 1], [], []>} : vector<1x32xf32>, vector<32x128xf32>, vector<1x128xf32> -> vector<1x128xf32>
    %355 = arith.addf %353, %354 : vector<1x128xf32>
    %356 = tpu.concatenate %345, %347 in 1 : vector<1x32xf32>, vector<1x32xf32> -> vector<1x64xf32>
    %cst_201 = arith.constant dense<0.000000e+00> : vector<1x128xf32>
    %357 = tpu.matmul %356, %13, %cst_201 {dimension_numbers = #tpu.dot_dimension_numbers<[1], [0], [0], [1], [0, 0, 1, 1], [], []>} : vector<1x64xf32>, vector<64x128xf32>, vector<1x128xf32> -> vector<1x128xf32>
    %358 = arith.addf %357, %15 : vector<1x128xf32>
    %359 = arith.negf %355 : vector<1x128xf32>
    %360 = math.exp %359 : vector<1x128xf32>
    %cst_202 = arith.constant 1.000000e+00 : f32
    %361 = vector.broadcast %cst_202 : f32 to vector<1x128xf32>
    %362 = arith.addf %361, %360 : vector<1x128xf32>
    %363 = arith.divf %361, %362 : vector<1x128xf32>
    %364 = vector.extract_strided_slice %355 {offsets = [0, 64], sizes = [1, 32], strides = [1, 1]} : vector<1x128xf32> to vector<1x32xf32>
    %365 = math.tanh %364 : vector<1x32xf32>
    %366 = vector.extract_strided_slice %363 {offsets = [0, 32], sizes = [1, 32], strides = [1, 1]} : vector<1x128xf32> to vector<1x32xf32>
    %367 = arith.mulf %366, %349 : vector<1x32xf32>
    %368 = vector.extract_strided_slice %363 {offsets = [0, 0], sizes = [1, 32], strides = [1, 1]} : vector<1x128xf32> to vector<1x32xf32>
    %369 = arith.mulf %368, %365 : vector<1x32xf32>
    %370 = arith.addf %367, %369 : vector<1x32xf32>
    %371 = vector.extract_strided_slice %363 {offsets = [0, 96], sizes = [1, 32], strides = [1, 1]} : vector<1x128xf32> to vector<1x32xf32>
    %372 = math.tanh %370 : vector<1x32xf32>
    %373 = arith.mulf %371, %372 : vector<1x32xf32>
    %c0_203 = arith.constant 0 : index
    %c0_204 = arith.constant 0 : index
    %c0_205 = arith.constant 0 : index
    %374 = vector.load %arg9[%c0_203, %c0_204, %c0_205] : memref<2x1x32xf32, #tpu.memory_space<vmem>>, vector<1x1x32xf32>
    %375 = vector.shape_cast %374 : vector<1x1x32xf32> to vector<1x32xf32>
    %376 = vector.shape_cast %373 : vector<1x32xf32> to vector<1x1x32xf32>
    tpu.vector_store %arg9[%c0_203, %c0_204, %c0_205], %376 {strides = array<i32>} : memref<2x1x32xf32, #tpu.memory_space<vmem>>, vector<1x1x32xf32>,
    %c0_206 = arith.constant 0 : index
    %c0_207 = arith.constant 0 : index
    %c0_208 = arith.constant 0 : index
    %377 = vector.load %arg10[%c0_206, %c0_207, %c0_208] : memref<2x1x32xf32, #tpu.memory_space<vmem>>, vector<1x1x32xf32>
    %378 = vector.shape_cast %377 : vector<1x1x32xf32> to vector<1x32xf32>
    %379 = vector.shape_cast %370 : vector<1x32xf32> to vector<1x1x32xf32>
    tpu.vector_store %arg10[%c0_206, %c0_207, %c0_208], %379 {strides = array<i32>} : memref<2x1x32xf32, #tpu.memory_space<vmem>>, vector<1x1x32xf32>,
    %380 = arith.negf %358 : vector<1x128xf32>
    %381 = math.exp %380 : vector<1x128xf32>
    %cst_209 = arith.constant 1.000000e+00 : f32
    %382 = vector.broadcast %cst_209 : f32 to vector<1x128xf32>
    %383 = arith.addf %382, %381 : vector<1x128xf32>
    %384 = arith.divf %382, %383 : vector<1x128xf32>
    %385 = vector.extract_strided_slice %358 {offsets = [0, 64], sizes = [1, 32], strides = [1, 1]} : vector<1x128xf32> to vector<1x32xf32>
    %386 = math.tanh %385 : vector<1x32xf32>
    %387 = vector.extract_strided_slice %384 {offsets = [0, 32], sizes = [1, 32], strides = [1, 1]} : vector<1x128xf32> to vector<1x32xf32>
    %388 = arith.mulf %387, %351 : vector<1x32xf32>
    %389 = vector.extract_strided_slice %384 {offsets = [0, 0], sizes = [1, 32], strides = [1, 1]} : vector<1x128xf32> to vector<1x32xf32>
    %390 = arith.mulf %389, %386 : vector<1x32xf32>
    %391 = arith.addf %388, %390 : vector<1x32xf32>
    %392 = vector.extract_strided_slice %384 {offsets = [0, 96], sizes = [1, 32], strides = [1, 1]} : vector<1x128xf32> to vector<1x32xf32>
    %393 = math.tanh %391 : vector<1x32xf32>
    %394 = arith.mulf %392, %393 : vector<1x32xf32>
    %c1_210 = arith.constant 1 : index
    %c0_211 = arith.constant 0 : index
    %c0_212 = arith.constant 0 : index
    %395 = vector.load %arg9[%c1_210, %c0_211, %c0_212] : memref<2x1x32xf32, #tpu.memory_space<vmem>>, vector<1x1x32xf32>
    %396 = vector.shape_cast %395 : vector<1x1x32xf32> to vector<1x32xf32>
    %397 = vector.shape_cast %394 : vector<1x32xf32> to vector<1x1x32xf32>
    tpu.vector_store %arg9[%c1_210, %c0_211, %c0_212], %397 {strides = array<i32>} : memref<2x1x32xf32, #tpu.memory_space<vmem>>, vector<1x1x32xf32>,
    %c1_213 = arith.constant 1 : index
    %c0_214 = arith.constant 0 : index
    %c0_215 = arith.constant 0 : index
    %398 = vector.load %arg10[%c1_213, %c0_214, %c0_215] : memref<2x1x32xf32, #tpu.memory_space<vmem>>, vector<1x1x32xf32>
    %399 = vector.shape_cast %398 : vector<1x1x32xf32> to vector<1x32xf32>
    %400 = vector.shape_cast %391 : vector<1x32xf32> to vector<1x1x32xf32>
    tpu.vector_store %arg10[%c1_213, %c0_214, %c0_215], %400 {strides = array<i32>} : memref<2x1x32xf32, #tpu.memory_space<vmem>>, vector<1x1x32xf32>,
    %c1_i32_216 = arith.constant 1 : i32
    %401 = arith.subi %c6_i32, %c1_i32_216 : i32
    %402 = arith.index_cast %401 : i32 to index
    %c0_217 = arith.constant 0 : index
    %403 = vector.load %arg12[%402, %c0_217] : memref<8x32xf32, #tpu.memory_space<vmem>>, vector<1x32xf32>
    tpu.vector_store %arg12[%402, %c0_217], %394 {strides = array<i32>} : memref<8x32xf32, #tpu.memory_space<vmem>>, vector<1x32xf32>,
    %c7_i32 = arith.constant 7 : i32
    %c0_218 = arith.constant 0 : index
    %c0_219 = arith.constant 0 : index
    %c0_220 = arith.constant 0 : index
    %404 = vector.load %arg9[%c0_218, %c0_219, %c0_220] : memref<2x1x32xf32, #tpu.memory_space<vmem>>, vector<1x1x32xf32>
    %405 = vector.shape_cast %404 : vector<1x1x32xf32> to vector<1x32xf32>
    %c1_221 = arith.constant 1 : index
    %c0_222 = arith.constant 0 : index
    %c0_223 = arith.constant 0 : index
    %406 = vector.load %arg9[%c1_221, %c0_222, %c0_223] : memref<2x1x32xf32, #tpu.memory_space<vmem>>, vector<1x1x32xf32>
    %407 = vector.shape_cast %406 : vector<1x1x32xf32> to vector<1x32xf32>
    %c0_224 = arith.constant 0 : index
    %c0_225 = arith.constant 0 : index
    %c0_226 = arith.constant 0 : index
    %408 = vector.load %arg10[%c0_224, %c0_225, %c0_226] : memref<2x1x32xf32, #tpu.memory_space<vmem>>, vector<1x1x32xf32>
    %409 = vector.shape_cast %408 : vector<1x1x32xf32> to vector<1x32xf32>
    %c1_227 = arith.constant 1 : index
    %c0_228 = arith.constant 0 : index
    %c0_229 = arith.constant 0 : index
    %410 = vector.load %arg10[%c1_227, %c0_228, %c0_229] : memref<2x1x32xf32, #tpu.memory_space<vmem>>, vector<1x1x32xf32>
    %411 = vector.shape_cast %410 : vector<1x1x32xf32> to vector<1x32xf32>
    %412 = arith.index_cast %c7_i32 : i32 to index
    %c0_230 = arith.constant 0 : index
    %413 = vector.load %arg11[%412, %c0_230] : memref<8x128xf32, #tpu.memory_space<vmem>>, vector<1x128xf32>
    %cst_231 = arith.constant dense<0.000000e+00> : vector<1x128xf32>
    %414 = tpu.matmul %405, %11, %cst_231 {dimension_numbers = #tpu.dot_dimension_numbers<[1], [0], [0], [1], [0, 0, 1, 1], [], []>} : vector<1x32xf32>, vector<32x128xf32>, vector<1x128xf32> -> vector<1x128xf32>
    %415 = arith.addf %413, %414 : vector<1x128xf32>
    %416 = tpu.concatenate %405, %407 in 1 : vector<1x32xf32>, vector<1x32xf32> -> vector<1x64xf32>
    %cst_232 = arith.constant dense<0.000000e+00> : vector<1x128xf32>
    %417 = tpu.matmul %416, %13, %cst_232 {dimension_numbers = #tpu.dot_dimension_numbers<[1], [0], [0], [1], [0, 0, 1, 1], [], []>} : vector<1x64xf32>, vector<64x128xf32>, vector<1x128xf32> -> vector<1x128xf32>
    %418 = arith.addf %417, %15 : vector<1x128xf32>
    %419 = arith.negf %415 : vector<1x128xf32>
    %420 = math.exp %419 : vector<1x128xf32>
    %cst_233 = arith.constant 1.000000e+00 : f32
    %421 = vector.broadcast %cst_233 : f32 to vector<1x128xf32>
    %422 = arith.addf %421, %420 : vector<1x128xf32>
    %423 = arith.divf %421, %422 : vector<1x128xf32>
    %424 = vector.extract_strided_slice %415 {offsets = [0, 64], sizes = [1, 32], strides = [1, 1]} : vector<1x128xf32> to vector<1x32xf32>
    %425 = math.tanh %424 : vector<1x32xf32>
    %426 = vector.extract_strided_slice %423 {offsets = [0, 32], sizes = [1, 32], strides = [1, 1]} : vector<1x128xf32> to vector<1x32xf32>
    %427 = arith.mulf %426, %409 : vector<1x32xf32>
    %428 = vector.extract_strided_slice %423 {offsets = [0, 0], sizes = [1, 32], strides = [1, 1]} : vector<1x128xf32> to vector<1x32xf32>
    %429 = arith.mulf %428, %425 : vector<1x32xf32>
    %430 = arith.addf %427, %429 : vector<1x32xf32>
    %431 = vector.extract_strided_slice %423 {offsets = [0, 96], sizes = [1, 32], strides = [1, 1]} : vector<1x128xf32> to vector<1x32xf32>
    %432 = math.tanh %430 : vector<1x32xf32>
    %433 = arith.mulf %431, %432 : vector<1x32xf32>
    %c0_234 = arith.constant 0 : index
    %c0_235 = arith.constant 0 : index
    %c0_236 = arith.constant 0 : index
    %434 = vector.load %arg9[%c0_234, %c0_235, %c0_236] : memref<2x1x32xf32, #tpu.memory_space<vmem>>, vector<1x1x32xf32>
    %435 = vector.shape_cast %434 : vector<1x1x32xf32> to vector<1x32xf32>
    %436 = vector.shape_cast %433 : vector<1x32xf32> to vector<1x1x32xf32>
    tpu.vector_store %arg9[%c0_234, %c0_235, %c0_236], %436 {strides = array<i32>} : memref<2x1x32xf32, #tpu.memory_space<vmem>>, vector<1x1x32xf32>,
    %c0_237 = arith.constant 0 : index
    %c0_238 = arith.constant 0 : index
    %c0_239 = arith.constant 0 : index
    %437 = vector.load %arg10[%c0_237, %c0_238, %c0_239] : memref<2x1x32xf32, #tpu.memory_space<vmem>>, vector<1x1x32xf32>
    %438 = vector.shape_cast %437 : vector<1x1x32xf32> to vector<1x32xf32>
    %439 = vector.shape_cast %430 : vector<1x32xf32> to vector<1x1x32xf32>
    tpu.vector_store %arg10[%c0_237, %c0_238, %c0_239], %439 {strides = array<i32>} : memref<2x1x32xf32, #tpu.memory_space<vmem>>, vector<1x1x32xf32>,
    %440 = arith.negf %418 : vector<1x128xf32>
    %441 = math.exp %440 : vector<1x128xf32>
    %cst_240 = arith.constant 1.000000e+00 : f32
    %442 = vector.broadcast %cst_240 : f32 to vector<1x128xf32>
    %443 = arith.addf %442, %441 : vector<1x128xf32>
    %444 = arith.divf %442, %443 : vector<1x128xf32>
    %445 = vector.extract_strided_slice %418 {offsets = [0, 64], sizes = [1, 32], strides = [1, 1]} : vector<1x128xf32> to vector<1x32xf32>
    %446 = math.tanh %445 : vector<1x32xf32>
    %447 = vector.extract_strided_slice %444 {offsets = [0, 32], sizes = [1, 32], strides = [1, 1]} : vector<1x128xf32> to vector<1x32xf32>
    %448 = arith.mulf %447, %411 : vector<1x32xf32>
    %449 = vector.extract_strided_slice %444 {offsets = [0, 0], sizes = [1, 32], strides = [1, 1]} : vector<1x128xf32> to vector<1x32xf32>
    %450 = arith.mulf %449, %446 : vector<1x32xf32>
    %451 = arith.addf %448, %450 : vector<1x32xf32>
    %452 = vector.extract_strided_slice %444 {offsets = [0, 96], sizes = [1, 32], strides = [1, 1]} : vector<1x128xf32> to vector<1x32xf32>
    %453 = math.tanh %451 : vector<1x32xf32>
    %454 = arith.mulf %452, %453 : vector<1x32xf32>
    %c1_241 = arith.constant 1 : index
    %c0_242 = arith.constant 0 : index
    %c0_243 = arith.constant 0 : index
    %455 = vector.load %arg9[%c1_241, %c0_242, %c0_243] : memref<2x1x32xf32, #tpu.memory_space<vmem>>, vector<1x1x32xf32>
    %456 = vector.shape_cast %455 : vector<1x1x32xf32> to vector<1x32xf32>
    %457 = vector.shape_cast %454 : vector<1x32xf32> to vector<1x1x32xf32>
    tpu.vector_store %arg9[%c1_241, %c0_242, %c0_243], %457 {strides = array<i32>} : memref<2x1x32xf32, #tpu.memory_space<vmem>>, vector<1x1x32xf32>,
    %c1_244 = arith.constant 1 : index
    %c0_245 = arith.constant 0 : index
    %c0_246 = arith.constant 0 : index
    %458 = vector.load %arg10[%c1_244, %c0_245, %c0_246] : memref<2x1x32xf32, #tpu.memory_space<vmem>>, vector<1x1x32xf32>
    %459 = vector.shape_cast %458 : vector<1x1x32xf32> to vector<1x32xf32>
    %460 = vector.shape_cast %451 : vector<1x32xf32> to vector<1x1x32xf32>
    tpu.vector_store %arg10[%c1_244, %c0_245, %c0_246], %460 {strides = array<i32>} : memref<2x1x32xf32, #tpu.memory_space<vmem>>, vector<1x1x32xf32>,
    %c1_i32_247 = arith.constant 1 : i32
    %461 = arith.subi %c7_i32, %c1_i32_247 : i32
    %462 = arith.index_cast %461 : i32 to index
    %c0_248 = arith.constant 0 : index
    %463 = vector.load %arg12[%462, %c0_248] : memref<8x32xf32, #tpu.memory_space<vmem>>, vector<1x32xf32>
    tpu.vector_store %arg12[%462, %c0_248], %454 {strides = array<i32>} : memref<8x32xf32, #tpu.memory_space<vmem>>, vector<1x32xf32>,
    %c7_i32_249 = arith.constant 7 : i32
    %c0_250 = arith.constant 0 : index
    %c0_251 = arith.constant 0 : index
    %c0_252 = arith.constant 0 : index
    %464 = vector.load %arg9[%c0_250, %c0_251, %c0_252] : memref<2x1x32xf32, #tpu.memory_space<vmem>>, vector<1x1x32xf32>
    %465 = vector.shape_cast %464 : vector<1x1x32xf32> to vector<1x32xf32>
    %c1_253 = arith.constant 1 : index
    %c0_254 = arith.constant 0 : index
    %c0_255 = arith.constant 0 : index
    %466 = vector.load %arg9[%c1_253, %c0_254, %c0_255] : memref<2x1x32xf32, #tpu.memory_space<vmem>>, vector<1x1x32xf32>
    %467 = vector.shape_cast %466 : vector<1x1x32xf32> to vector<1x32xf32>
    %c1_256 = arith.constant 1 : index
    %c0_257 = arith.constant 0 : index
    %c0_258 = arith.constant 0 : index
    %468 = vector.load %arg10[%c1_256, %c0_257, %c0_258] : memref<2x1x32xf32, #tpu.memory_space<vmem>>, vector<1x1x32xf32>
    %469 = vector.shape_cast %468 : vector<1x1x32xf32> to vector<1x32xf32>
    %470 = tpu.concatenate %465, %467 in 1 : vector<1x32xf32>, vector<1x32xf32> -> vector<1x64xf32>
    %cst_259 = arith.constant dense<0.000000e+00> : vector<1x128xf32>
    %471 = tpu.matmul %470, %13, %cst_259 {dimension_numbers = #tpu.dot_dimension_numbers<[1], [0], [0], [1], [0, 0, 1, 1], [], []>} : vector<1x64xf32>, vector<64x128xf32>, vector<1x128xf32> -> vector<1x128xf32>
    %472 = arith.addf %471, %15 : vector<1x128xf32>
    %473 = arith.negf %472 : vector<1x128xf32>
    %474 = math.exp %473 : vector<1x128xf32>
    %cst_260 = arith.constant 1.000000e+00 : f32
    %475 = vector.broadcast %cst_260 : f32 to vector<1x128xf32>
    %476 = arith.addf %475, %474 : vector<1x128xf32>
    %477 = arith.divf %475, %476 : vector<1x128xf32>
    %478 = vector.extract_strided_slice %472 {offsets = [0, 64], sizes = [1, 32], strides = [1, 1]} : vector<1x128xf32> to vector<1x32xf32>
    %479 = math.tanh %478 : vector<1x32xf32>
    %480 = vector.extract_strided_slice %477 {offsets = [0, 32], sizes = [1, 32], strides = [1, 1]} : vector<1x128xf32> to vector<1x32xf32>
    %481 = arith.mulf %480, %469 : vector<1x32xf32>
    %482 = vector.extract_strided_slice %477 {offsets = [0, 0], sizes = [1, 32], strides = [1, 1]} : vector<1x128xf32> to vector<1x32xf32>
    %483 = arith.mulf %482, %479 : vector<1x32xf32>
    %484 = arith.addf %481, %483 : vector<1x32xf32>
    %485 = vector.extract_strided_slice %477 {offsets = [0, 96], sizes = [1, 32], strides = [1, 1]} : vector<1x128xf32> to vector<1x32xf32>
    %486 = math.tanh %484 : vector<1x32xf32>
    %487 = arith.mulf %485, %486 : vector<1x32xf32>
    %c1_261 = arith.constant 1 : index
    %c0_262 = arith.constant 0 : index
    %c0_263 = arith.constant 0 : index
    %488 = vector.load %arg9[%c1_261, %c0_262, %c0_263] : memref<2x1x32xf32, #tpu.memory_space<vmem>>, vector<1x1x32xf32>
    %489 = vector.shape_cast %488 : vector<1x1x32xf32> to vector<1x32xf32>
    %490 = vector.shape_cast %487 : vector<1x32xf32> to vector<1x1x32xf32>
    tpu.vector_store %arg9[%c1_261, %c0_262, %c0_263], %490 {strides = array<i32>} : memref<2x1x32xf32, #tpu.memory_space<vmem>>, vector<1x1x32xf32>,
    %c1_264 = arith.constant 1 : index
    %c0_265 = arith.constant 0 : index
    %c0_266 = arith.constant 0 : index
    %491 = vector.load %arg10[%c1_264, %c0_265, %c0_266] : memref<2x1x32xf32, #tpu.memory_space<vmem>>, vector<1x1x32xf32>
    %492 = vector.shape_cast %491 : vector<1x1x32xf32> to vector<1x32xf32>
    %493 = vector.shape_cast %484 : vector<1x32xf32> to vector<1x1x32xf32>
    tpu.vector_store %arg10[%c1_264, %c0_265, %c0_266], %493 {strides = array<i32>} : memref<2x1x32xf32, #tpu.memory_space<vmem>>, vector<1x1x32xf32>,
    %c7 = arith.constant 7 : index
    %c0_267 = arith.constant 0 : index
    %494 = vector.load %arg12[%c7, %c0_267] : memref<8x32xf32, #tpu.memory_space<vmem>>, vector<1x32xf32>
    tpu.vector_store %arg12[%c7, %c0_267], %487 {strides = array<i32>} : memref<8x32xf32, #tpu.memory_space<vmem>>, vector<1x32xf32>,
    %c0_268 = arith.constant 0 : index
    %c0_269 = arith.constant 0 : index
    %495 = vector.load %arg12[%c0_268, %c0_269] : memref<8x32xf32, #tpu.memory_space<vmem>>, vector<8x32xf32>
    %c0_270 = arith.constant 0 : index
    %c0_271 = arith.constant 0 : index
    %496 = vector.load %arg6[%c0_270, %c0_271] : memref<32x128xf32, #tpu.memory_space<vmem>>, vector<32x128xf32>
    %cst_272 = arith.constant dense<0.000000e+00> : vector<8x128xf32>
    %497 = tpu.matmul %495, %496, %cst_272 {dimension_numbers = #tpu.dot_dimension_numbers<[1], [0], [0], [1], [0, 0, 1, 1], [], []>} : vector<8x32xf32>, vector<32x128xf32>, vector<8x128xf32> -> vector<8x128xf32>
    %c0_273 = arith.constant 0 : index
    %c0_274 = arith.constant 0 : index
    %498 = vector.load %arg7[%c0_273, %c0_274] : memref<1x128xf32, #tpu.memory_space<vmem>>, vector<1x128xf32>
    %499 = vector.broadcast %498 : vector<1x128xf32> to vector<8x128xf32>
    %500 = arith.addf %497, %499 : vector<8x128xf32>
    %c0_275 = arith.constant 0 : index
    %c0_276 = arith.constant 0 : index
    %501 = vector.load %arg8[%c0_275, %c0_276] : memref<8x128xf32, #tpu.memory_space<vmem>>, vector<8x128xf32>
    tpu.vector_store %arg8[%c0_275, %c0_276], %500 {strides = array<i32>} : memref<8x128xf32, #tpu.memory_space<vmem>>, vector<8x128xf32>,
    return
  }
  func.func @transform_0(%arg0: i32) -> (i32, i32) {
    %c0_i32 = arith.constant 0 : i32
    %c0_i32_0 = arith.constant 0 : i32
    return %arg0, %c0_i32 : i32, i32
  }
  func.func @transform_1(%arg0: i32) -> (i32, i32) {
    %c0_i32 = arith.constant 0 : i32
    %c0_i32_0 = arith.constant 0 : i32
    %c0_i32_1 = arith.constant 0 : i32
    return %c0_i32, %c0_i32_0 : i32, i32
  }
  func.func @transform_2(%arg0: i32) -> (i32, i32) {
    %c0_i32 = arith.constant 0 : i32
    %c0_i32_0 = arith.constant 0 : i32
    %c0_i32_1 = arith.constant 0 : i32
    return %c0_i32, %c0_i32_0 : i32, i32
  }
  func.func @transform_3(%arg0: i32) -> (i32, i32, i32) {
    %c0_i32 = arith.constant 0 : i32
    %c0_i32_0 = arith.constant 0 : i32
    %c0_i32_1 = arith.constant 0 : i32
    %c0_i32_2 = arith.constant 0 : i32
    return %c0_i32, %c0_i32_0, %c0_i32_1 : i32, i32, i32
  }
  func.func @transform_4(%arg0: i32) -> (i32, i32, i32) {
    %c0_i32 = arith.constant 0 : i32
    %c0_i32_0 = arith.constant 0 : i32
    %c0_i32_1 = arith.constant 0 : i32
    %c0_i32_2 = arith.constant 0 : i32
    return %c0_i32, %c0_i32_0, %c0_i32_1 : i32, i32, i32
  }
  func.func @transform_5(%arg0: i32) -> (i32, i32) {
    %c0_i32 = arith.constant 0 : i32
    %c0_i32_0 = arith.constant 0 : i32
    %c0_i32_1 = arith.constant 0 : i32
    return %c0_i32, %c0_i32_0 : i32, i32
  }
  func.func @transform_6(%arg0: i32) -> (i32, i32) {
    %c0_i32 = arith.constant 0 : i32
    %c0_i32_0 = arith.constant 0 : i32
    %c0_i32_1 = arith.constant 0 : i32
    return %c0_i32, %c0_i32_0 : i32, i32
  }
  func.func @transform_7(%arg0: i32) -> (i32, i32) {
    %c0_i32 = arith.constant 0 : i32
    %c0_i32_0 = arith.constant 0 : i32
    return %arg0, %c0_i32 : i32, i32
  }
}

</mosaic_0001>

<llo_original>
// kernel: tpu_custom_call.1
$region0: #{tpu_custom_call.1}
  #allocation0 [shape = 'u32[]', space=smem, size = 0x4, offset = 0x4, fixed_abs, tag = 'smem constant byte address 0x4 - core index']
  #allocation1 [shape = 'u32[72,128]{1,0:T(1,128)}', space=vmem, size = 0x9000, scoped, tag = 'internal scratch']
  #allocation2 [shape = 'f32[2,1,32]{2,1,0:T(1,128)}', space=vmem, size = 0x400, scoped, tag = 'scratch operand']
  #allocation3 [shape = 'f32[2,1,32]{2,1,0:T(1,128)}', space=vmem, size = 0x400, scoped, tag = 'scratch operand']
  #allocation4 [shape = 'f32[8,128]{1,0:T(8,128)}', space=vmem, size = 0x1000, scoped, tag = 'scratch operand']
  #allocation5 [shape = 'f32[8,32]{1,0:T(8,128)}', space=vmem, size = 0x1000, scoped, tag = 'scratch operand']
  %s0 = inlined_call_operand.hbm [shape: f32[8,16], index: 0, kind: input, shape index: {}]
  %s1 = inlined_call_operand.hbm [shape: f32[16,128], index: 1, kind: input, shape index: {}]
  %s2 = inlined_call_operand.hbm [shape: f32[32,128], index: 2, kind: input, shape index: {}]
  %s3 = inlined_call_operand.hbm [shape: f32[1,64,128], index: 3, kind: input, shape index: {}]
  %s4 = inlined_call_operand.vmem [shape: f32[2,1,128], index: 4, kind: input, shape index: {}]
  %s5 = inlined_call_operand.hbm [shape: f32[32,128], index: 5, kind: input, shape index: {}]
  %s6 = inlined_call_operand.vmem [shape: f32[1,128], index: 6, kind: input, shape index: {}]
  %s7 = inlined_call_operand.hbm [shape: f32[8,128], index: 7, kind: output, shape index: {}]
  %s8 = sld [smem:[#allocation0]]
  $region62: #{tpu_custom_call.1} parent=0
    _
  %s10 = ssub.s32 1, %s8
  %s11 = scalar_select 0, %s10, %s8
  $region1: #{tpu_custom_call.1} parent=0
    #allocation6 [shape = 'u8[4096]{0}', space=vmem, size = 0x1000, scoped, tag = 'input window, operand 0, single buffered']
    #allocation7 [shape = 's32[1]{0}', space=sflag, size = 0x4, scoped, tag = 'scoped memory for tpu_custom_call.1']
    #allocation8 [shape = 's32[1]{0}', space=sflag, size = 0x4, scoped, tag = 'scoped memory for tpu_custom_call.1']
    #allocation9 [shape = 'u8[8192]{0}', space=vmem, size = 0x2000, scoped, tag = 'input window, operand 1, single buffered']
    #allocation10 [shape = 's32[1]{0}', space=sflag, size = 0x4, scoped, tag = 'scoped memory for tpu_custom_call.1']
    #allocation11 [shape = 'u8[16384]{0}', space=vmem, size = 0x4000, scoped, tag = 'input window, operand 2, single buffered']
    #allocation12 [shape = 'u8[32768]{0}', space=vmem, size = 0x8000, scoped, tag = 'input window, operand 3, single buffered']
    #allocation13 [shape = 's32[1]{0}', space=sflag, size = 0x4, scoped, tag = 'scoped memory for tpu_custom_call.1']
    #allocation14 [shape = 'u8[16384]{0}', space=vmem, size = 0x4000, scoped, tag = 'input window, operand 5, single buffered']
    #allocation15 [shape = 'u8[4096]{0}', space=vmem, size = 0x1000, scoped, tag = 'output window, operand 0, single buffered']
    %12 = vsyncpa [#allocation7], 0
    %13 = vsyncpa [#allocation10], 0
    %14 = vsyncpa [#allocation13], 0
    %15 = vsyncpa [#allocation8], 0
    // Predicated region
    $region2: #{tpu_custom_call.1} parent=1 // pred_check
      _
    $region3: #{tpu_custom_call.1} parent=1 // pred_check_branch
      %17 = sbr.rel (0) target = $region5
    $region4: #{tpu_custom_call.1} parent=1 // pred_region
      %19 = vsyncadd [#allocation7], 0
      %s21 = sshll.u32 %s0, 4
      %s22 = int_to_ptr.hbm [resolvable:$true] %s21
      %s23 = sshll.u32 [#allocation6], 4
      %s24 = int_to_ptr.vmem [resolvable:$true] %s23
      %26 = dma.hbm_to_vmem [thread:$0]  %s22, 128, %s24, [#allocation7]
    $region5: #{tpu_custom_call.1} parent=1 // pred_fallthru
      _
    // Predicated region
    $region6: #{tpu_custom_call.1} parent=1 // pred_check
      _
    $region7: #{tpu_custom_call.1} parent=1 // pred_check_branch
      %28 = sbr.rel (0) target = $region9
    $region8: #{tpu_custom_call.1} parent=1 // pred_region
      %30 = vsyncadd [#allocation10], 0
      %s31 = sshll.u32 %s1, 4
      %s32 = int_to_ptr.hbm [resolvable:$true] %s31
      %s33 = sshll.u32 [#allocation9], 4
      %s34 = int_to_ptr.vmem [resolvable:$true] %s33
      %39 = dma.hbm_to_vmem [thread:$0]  %s32, 256, %s34, [#allocation10], 128, 128, 8
    $region9: #{tpu_custom_call.1} parent=1 // pred_fallthru
      _
    // Predicated region
    $region10: #{tpu_custom_call.1} parent=1 // pred_check
      _
    $region11: #{tpu_custom_call.1} parent=1 // pred_check_branch
      %41 = sbr.rel (0) target = $region13
    $region12: #{tpu_custom_call.1} parent=1 // pred_region
      %43 = vsyncadd [#allocation10], 0
      %s44 = sshll.u32 %s2, 4
      %s45 = int_to_ptr.hbm [resolvable:$true] %s44
      %s46 = sshll.u32 [#allocation11], 4
      %s47 = int_to_ptr.vmem [resolvable:$true] %s46
      %52 = dma.hbm_to_vmem [thread:$0]  %s45, 512, %s47, [#allocation10], 128, 128, 8
    $region13: #{tpu_custom_call.1} parent=1 // pred_fallthru
      _
    // Predicated region
    $region14: #{tpu_custom_call.1} parent=1 // pred_check
      _
    $region15: #{tpu_custom_call.1} parent=1 // pred_check_branch
      %54 = sbr.rel (0) target = $region17
    $region16: #{tpu_custom_call.1} parent=1 // pred_region
      %56 = vsyncadd [#allocation13], 0
      %s57 = sshll.u32 %s3, 4
      %s58 = int_to_ptr.hbm [resolvable:$true] %s57
      %s59 = sshll.u32 [#allocation12], 4
      %s60 = int_to_ptr.vmem [resolvable:$true] %s59
      %65 = dma.hbm_to_vmem [thread:$0]  %s58, 1024, %s60, [#allocation13], 128, 128, 8
    $region17: #{tpu_custom_call.1} parent=1 // pred_fallthru
      _
    // Predicated region
    $region18: #{tpu_custom_call.1} parent=1 // pred_check
      _
    $region19: #{tpu_custom_call.1} parent=1 // pred_check_branch
      %67 = sbr.rel (0) target = $region21
    $region20: #{tpu_custom_call.1} parent=1 // pred_region
      _
    $region21: #{tpu_custom_call.1} parent=1 // pred_fallthru
      _
    // Predicated region
    $region22: #{tpu_custom_call.1} parent=1 // pred_check
      _
    $region23: #{tpu_custom_call.1} parent=1 // pred_check_branch
      %69 = sbr.rel (0) target = $region25
    $region24: #{tpu_custom_call.1} parent=1 // pred_region
      %71 = vsyncadd [#allocation13], 0
      %s72 = sshll.u32 %s5, 4
      %s73 = int_to_ptr.hbm [resolvable:$true] %s72
      %s74 = sshll.u32 [#allocation14], 4
      %s75 = int_to_ptr.vmem [resolvable:$true] %s74
      %80 = dma.hbm_to_vmem [thread:$0]  %s73, 512, %s75, [#allocation13], 128, 128, 8
    $region25: #{tpu_custom_call.1} parent=1 // pred_fallthru
      _
    // Predicated region
    $region26: #{tpu_custom_call.1} parent=1 // pred_check
      _
    $region27: #{tpu_custom_call.1} parent=1 // pred_check_branch
      %82 = sbr.rel (0) target = $region29
    $region28: #{tpu_custom_call.1} parent=1 // pred_region
      _
    $region29: #{tpu_custom_call.1} parent=1 // pred_fallthru
      _
    // Predicated region
    $region30: #{tpu_custom_call.1} parent=1 // pred_check
      _
    $region31: #{tpu_custom_call.1} parent=1 // pred_check_branch
      %84 = sbr.rel (0) target = $region33
    $region32: #{tpu_custom_call.1} parent=1 // pred_region
      %86 = dma.done [#allocation7], 128
    $region33: #{tpu_custom_call.1} parent=1 // pred_fallthru
      _
    // Predicated region
    $region34: #{tpu_custom_call.1} parent=1 // pred_check
      _
    $region35: #{tpu_custom_call.1} parent=1 // pred_check_branch
      %88 = sbr.rel (0) target = $region37
    $region36: #{tpu_custom_call.1} parent=1 // pred_region
      %90 = dma.done [#allocation10], 256
    $region37: #{tpu_custom_call.1} parent=1 // pred_fallthru
      _
    // Predicated region
    $region38: #{tpu_custom_call.1} parent=1 // pred_check
      _
    $region39: #{tpu_custom_call.1} parent=1 // pred_check_branch
      %92 = sbr.rel (0) target = $region41
    $region40: #{tpu_custom_call.1} parent=1 // pred_region
      %94 = dma.done [#allocation10], 512
    $region41: #{tpu_custom_call.1} parent=1 // pred_fallthru
      _
    // Predicated region
    $region42: #{tpu_custom_call.1} parent=1 // pred_check
      _
    $region43: #{tpu_custom_call.1} parent=1 // pred_check_branch
      %96 = sbr.rel (0) target = $region45
    $region44: #{tpu_custom_call.1} parent=1 // pred_region
      %98 = dma.done [#allocation13], 1024
    $region45: #{tpu_custom_call.1} parent=1 // pred_fallthru
      _
    // Predicated region
    $region46: #{tpu_custom_call.1} parent=1 // pred_check
      _
    $region47: #{tpu_custom_call.1} parent=1 // pred_check_branch
      %100 = sbr.rel (0) target = $region49
    $region48: #{tpu_custom_call.1} parent=1 // pred_region
      %102 = dma.done [#allocation13], 512
    $region49: #{tpu_custom_call.1} parent=1 // pred_fallthru
      _
    %p103 = scmp.eq.s32.totalorder 0, 0
    // Predicated region
    $region50: #{tpu_custom_call.1} parent=1 // pred_check
      %p104 = pneg %p103
    $region51: #{tpu_custom_call.1} parent=1 // pred_check_branch
      %106 = sbr.rel (%p104) target = $region53
    $region52: #{tpu_custom_call.1} parent=1 // pred_region
      %vm107 = vcmask 253952
      %108 = vst.msk [vmem:[#allocation2] sm:$0x1] %vm107, 0.0
      %109 = vst.msk [vmem:[#allocation2 + $0x1] sm:$0x1] %vm107, 0.0
      %110 = vst.msk [vmem:[#allocation3] sm:$0x1] %vm107, 0.0
      %111 = vst.msk [vmem:[#allocation3 + $0x1] sm:$0x1] %vm107, 0.0
    $region53: #{tpu_custom_call.1} parent=1 // pred_fallthru
      _
    %v112 = vld [vmem:[#allocation6] sm:$0xff]
    %v113 = vld [vmem:[#allocation9] sm:$0xff]
    %v114 = vld [vmem:[#allocation9 + $0x8] sm:$0xff]
    %v115 = vld [vmem:[%s4] sm:$0x1]
    %v117 = vperm.slane %v115, 0
    %vm119 = vcmask 130048
    %v121 = vsel %vm119, %v112, 0
    %123 = vmatpush.msra.mxu0 0.0
    %124 = vmatpush.msra.mxu0 0.0
    %125 = vmatpush.msra.mxu0 0.0
    %126 = vmatpush.msra.mxu0 0.0
    %127 = vmatpush.msra.mxu0 0.0
    %128 = vmatpush.msra.mxu0 0.0
    %129 = vmatpush.msra.mxu0 0.0
    %130 = vmatpush.msra.mxu0 0.0
    %131 = vmatpush.msra.mxu0 0.0
    %132 = vmatpush.msra.mxu0 0.0
    %133 = vmatpush.msra.mxu0 0.0
    %134 = vmatpush.msra.mxu0 0.0
    %135 = vmatpush.msra.mxu0 0.0
    %136 = vmatpush.msra.mxu0 0.0
    %137 = vmatpush.msra.mxu0 %v114
    %138 = vmatpush.msra.mxu0 %v113
    %139 = vmatmul.f32.gmra.mxu0 %v121
    %v140 = vpop.f32.mrf.mxu0
    %v141 = vadd.f32 %v117, %v140
    %142 = vdwg.mxu0
    %143 = vst [vmem:[#allocation4] sm:$0xff] %v141
    %v144 = vld [vmem:[#allocation11] sm:$0xff]
    %v145 = vld [vmem:[#allocation11 + $0x8] sm:$0xff]
    %v146 = vld [vmem:[#allocation11 + $0x10] sm:$0xff]
    %v147 = vld [vmem:[#allocation11 + $0x18] sm:$0xff]
    %v148 = vld [vmem:[#allocation12] sm:$0xff]
    %v149 = vld [vmem:[#allocation12 + $0x8] sm:$0xff]
    %v150 = vld [vmem:[#allocation12 + $0x10] sm:$0xff]
    %v151 = vld [vmem:[#allocation12 + $0x18] sm:$0xff]
    %v152 = vld [vmem:[#allocation12 + $0x20] sm:$0xff]
    %v153 = vld [vmem:[#allocation12 + $0x28] sm:$0xff]
    %v154 = vld [vmem:[#allocation12 + $0x30] sm:$0xff]
    %v155 = vld [vmem:[#allocation12 + $0x38] sm:$0xff]
    %s156 = scalar_lea.vmem %s4, 1
    %v157 = vld [vmem:[%s156] sm:$0x1]
    %v158 = vld [vmem:[#allocation2] sm:$0x1]
    %v159 = vld [vmem:[#allocation3] sm:$0x1]
    %v160 = vld [vmem:[#allocation4] sm:$0x1]
    %vm161 = vcmask 261120
    %v163 = vsel %vm161, %v158, 0
    %165 = vmatpush.msra.mxu0 0.0
    %166 = vmatpush.msra.mxu0 0.0
    %167 = vmatpush.msra.mxu0 0.0
    %168 = vmatpush.msra.mxu0 0.0
    %169 = vmatpush.msra.mxu0 0.0
    %170 = vmatpush.msra.mxu0 0.0
    %171 = vmatpush.msra.mxu0 0.0
    %172 = vmatpush.msra.mxu0 0.0
    %173 = vmatpush.msra.mxu0 0.0
    %174 = vmatpush.msra.mxu0 0.0
    %175 = vmatpush.msra.mxu0 0.0
    %176 = vmatpush.msra.mxu0 0.0
    %177 = vmatpush.msra.mxu0 %v147
    %178 = vmatpush.msra.mxu0 %v146
    %179 = vmatpush.msra.mxu0 %v145
    %180 = vmatpush.msra.mxu0 %v144
    %181 = vmatmul.f32.gmra.mxu0 %v163
    %v182 = vpop.f32.mrf.mxu0
    %v183 = vadd.f32 0.0, %v182
    %184 = vdwg.mxu0
    %v185 = vadd.f32 %v160, %v183
    %v186 = vxor.u32 %v185, 2147483648
    %v187 = vmul.f32 %v186, 1.442695
    %v188 = vpow.pop %v187
    %v189 = vadd.f32 %v188, 1.0
    %v190 = vrcp.pop %v189
    %v191 = vmul.f32 %v189, %v190
    %v192 = vsub.f32 1.0, %v191
    %v193 = vmul.f32 %v190, %v192
    %v194 = vadd.f32 %v190, %v193
    %vm195 = vweird.f32 %v189
    %vm196 = vweird.f32 %v190
    %vm197 = vmor %vm195, %vm196
    %v198 = vsel %vm197, %v190, %v194
    %v199 = vand.u32 2147483647, %v189
    %vm200 = vcmp.eq.f32.partialorder %v199, 8.507059e+37
    %v201 = vand.u32 %v189, 2147483648
    %v202 = vor.u32 1.1754944e-38, %v201
    %v203 = vsel %vm200, %v202, %v198
    %v204 = vmul.f32 1.0, %v203
    %v205 = vtanh.pop %v185
    %v207 = vperm.slane %v159, 0
    %208 = vrot.lane.b32.xlu0 %v207, 32
    %v209 = vpop.permute.xlu0 %208
    %v211 = vmul.f32 %v204, %v209
    %213 = vrot.lane.b32.xlu0 %v205, 64
    %v214 = vpop.permute.xlu0 %213
    %v216 = vmul.f32 %v204, %v214
    %218 = vrot.lane.b32.xlu0 %v216, 32
    %v219 = vpop.permute.xlu0 %218
    %v221 = vadd.f32 %v211, %v219
    %v222 = vtanh.pop %v221
    %224 = vrot.lane.b32.xlu0 %v222, 64
    %v225 = vpop.permute.xlu0 %224
    %v227 = vmul.f32 %v204, %v225
    %229 = vrot.lane.b32.xlu0 %v227, 32
    %v230 = vpop.permute.xlu0 %229
    %vm232 = vcmask 253952
    %233 = vst.msk [vmem:[#allocation2] sm:$0x1] %vm232, %v230
    %235 = vrot.lane.b32.xlu0 %v221, 96
    %v236 = vpop.permute.xlu0 %235
    %238 = vst.msk [vmem:[#allocation3] sm:$0x1] %vm232, %v236
    %v239 = vld [vmem:[#allocation2] sm:$0x1]
    %s240 = scalar_lea.vmem [#allocation2], 1
    %v241 = vld [vmem:[%s240] sm:$0x1]
    %v242 = vld [vmem:[#allocation3] sm:$0x1]
    %s243 = scalar_lea.vmem [#allocation3], 1
    %v244 = vld [vmem:[%s243] sm:$0x1]
    %v245 = vld [vmem:[#allocation4 + $0x1] sm:$0x1]
    %v247 = vsel %vm161, %v239, 0
    %249 = vmatpush.msra.mxu0 0.0
    %250 = vmatpush.msra.mxu0 0.0
    %251 = vmatpush.msra.mxu0 0.0
    %252 = vmatpush.msra.mxu0 0.0
    %253 = vmatpush.msra.mxu0 0.0
    %254 = vmatpush.msra.mxu0 0.0
    %255 = vmatpush.msra.mxu0 0.0
    %256 = vmatpush.msra.mxu0 0.0
    %257 = vmatpush.msra.mxu0 0.0
    %258 = vmatpush.msra.mxu0 0.0
    %259 = vmatpush.msra.mxu0 0.0
    %260 = vmatpush.msra.mxu0 0.0
    %261 = vmatpush.msra.mxu0 %v147
    %262 = vmatpush.msra.mxu0 %v146
    %263 = vmatpush.msra.mxu0 %v145
    %264 = vmatpush.msra.mxu0 %v144
    %265 = vmatmul.f32.gmra.mxu0 %v247
    %v266 = vpop.f32.mrf.mxu0
    %v267 = vadd.f32 0.0, %v266
    %268 = vdwg.mxu0
    %v269 = vadd.f32 %v245, %v267
    %v271 = vperm.slane %v241, 0
    %272 = vrot.lane.b32.xlu0 %v271, 32
    %v273 = vpop.permute.xlu0 %272
    %v275 = vsel %vm161, %v239, %v273
    %vm276 = vcmask 523264
    %v278 = vsel %vm276, %v275, 0
    %280 = vmatpush.msra.mxu0 0.0
    %281 = vmatpush.msra.mxu0 0.0
    %282 = vmatpush.msra.mxu0 0.0
    %283 = vmatpush.msra.mxu0 0.0
    %284 = vmatpush.msra.mxu0 0.0
    %285 = vmatpush.msra.mxu0 0.0
    %286 = vmatpush.msra.mxu0 0.0
    %287 = vmatpush.msra.mxu0 0.0
    %288 = vmatpush.msra.mxu0 %v155
    %289 = vmatpush.msra.mxu0 %v154
    %290 = vmatpush.msra.mxu0 %v153
    %291 = vmatpush.msra.mxu0 %v152
    %292 = vmatpush.msra.mxu0 %v151
    %293 = vmatpush.msra.mxu0 %v150
    %294 = vmatpush.msra.mxu0 %v149
    %295 = vmatpush.msra.mxu0 %v148
    %296 = vmatmul.f32.gmra.mxu0 %v278
    %v297 = vpop.f32.mrf.mxu0
    %v298 = vadd.f32 %v157, %v297
    %299 = vdwg.mxu0
    %v300 = vxor.u32 %v269, 2147483648
    %v301 = vmul.f32 %v300, 1.442695
    %v302 = vpow.pop %v301
    %v303 = vadd.f32 %v302, 1.0
    %v304 = vrcp.pop %v303
    %v305 = vmul.f32 %v303, %v304
    %v306 = vsub.f32 1.0, %v305
    %v307 = vmul.f32 %v304, %v306
    %v308 = vadd.f32 %v304, %v307
    %vm309 = vweird.f32 %v303
    %vm310 = vweird.f32 %v304
    %vm311 = vmor %vm309, %vm310
    %v312 = vsel %vm311, %v304, %v308
    %v313 = vand.u32 2147483647, %v303
    %vm314 = vcmp.eq.f32.partialorder %v313, 8.507059e+37
    %v315 = vand.u32 %v303, 2147483648
    %v316 = vor.u32 1.1754944e-38, %v315
    %v317 = vsel %vm314, %v316, %v312
    %v318 = vmul.f32 1.0, %v317
    %v319 = vtanh.pop %v269
    %v321 = vperm.slane %v242, 0
    %322 = vrot.lane.b32.xlu0 %v321, 32
    %v323 = vpop.permute.xlu0 %322
    %v325 = vmul.f32 %v318, %v323
    %327 = vrot.lane.b32.xlu0 %v319, 64
    %v328 = vpop.permute.xlu0 %327
    %v330 = vmul.f32 %v318, %v328
    %332 = vrot.lane.b32.xlu0 %v330, 32
    %v333 = vpop.permute.xlu0 %332
    %v335 = vadd.f32 %v325, %v333
    %v336 = vtanh.pop %v335
    %338 = vrot.lane.b32.xlu0 %v336, 64
    %v339 = vpop.permute.xlu0 %338
    %v341 = vmul.f32 %v318, %v339
    %343 = vrot.lane.b32.xlu0 %v341, 32
    %v344 = vpop.permute.xlu0 %343
    %346 = vst.msk [vmem:[#allocation2] sm:$0x1] %vm232, %v344
    %348 = vrot.lane.b32.xlu0 %v335, 96
    %v349 = vpop.permute.xlu0 %348
    %351 = vst.msk [vmem:[#allocation3] sm:$0x1] %vm232, %v349
    %v352 = vxor.u32 %v298, 2147483648
    %v353 = vmul.f32 %v352, 1.442695
    %v354 = vpow.pop %v353
    %v355 = vadd.f32 %v354, 1.0
    %v356 = vrcp.pop %v355
    %v357 = vmul.f32 %v355, %v356
    %v358 = vsub.f32 1.0, %v357
    %v359 = vmul.f32 %v356, %v358
    %v360 = vadd.f32 %v356, %v359
    %vm361 = vweird.f32 %v355
    %vm362 = vweird.f32 %v356
    %vm363 = vmor %vm361, %vm362
    %v364 = vsel %vm363, %v356, %v360
    %v365 = vand.u32 2147483647, %v355
    %vm366 = vcmp.eq.f32.partialorder %v365, 8.507059e+37
    %v367 = vand.u32 %v355, 2147483648
    %v368 = vor.u32 1.1754944e-38, %v367
    %v369 = vsel %vm366, %v368, %v364
    %v370 = vmul.f32 1.0, %v369
    %v371 = vtanh.pop %v298
    %v373 = vperm.slane %v244, 0
    %374 = vrot.lane.b32.xlu0 %v373, 32
    %v375 = vpop.permute.xlu0 %374
    %v377 = vmul.f32 %v370, %v375
    %379 = vrot.lane.b32.xlu0 %v371, 64
    %v380 = vpop.permute.xlu0 %379
    %v382 = vmul.f32 %v370, %v380
    %384 = vrot.lane.b32.xlu0 %v382, 32
    %v385 = vpop.permute.xlu0 %384
    %v387 = vadd.f32 %v377, %v385
    %v388 = vtanh.pop %v387
    %390 = vrot.lane.b32.xlu0 %v388, 64
    %v391 = vpop.permute.xlu0 %390
    %v393 = vmul.f32 %v370, %v391
    %395 = vrot.lane.b32.xlu0 %v393, 32
    %v396 = vpop.permute.xlu0 %395
    %398 = vst.msk [vmem:[%s240] sm:$0x1] %vm232, %v396
    %400 = vrot.lane.b32.xlu0 %v387, 96
    %v401 = vpop.permute.xlu0 %400
    %403 = vst.msk [vmem:[%s243] sm:$0x1] %vm232, %v401
    %404 = vst.msk [vmem:[#allocation5] sm:$0x1] %vm232, %v396
    %v405 = vld [vmem:[#allocation2] sm:$0x1]
    %v406 = vld [vmem:[%s240] sm:$0x1]
    %v407 = vld [vmem:[#allocation3] sm:$0x1]
    %v408 = vld [vmem:[%s243] sm:$0x1]
    %v409 = vld [vmem:[#allocation4 + $0x2] sm:$0x1]
    %v411 = vsel %vm161, %v405, 0
    %413 = vmatpush.msra.mxu0 0.0
    %414 = vmatpush.msra.mxu0 0.0
    %415 = vmatpush.msra.mxu0 0.0
    %416 = vmatpush.msra.mxu0 0.0
    %417 = vmatpush.msra.mxu0 0.0
    %418 = vmatpush.msra.mxu0 0.0
    %419 = vmatpush.msra.mxu0 0.0
    %420 = vmatpush.msra.mxu0 0.0
    %421 = vmatpush.msra.mxu0 0.0
    %422 = vmatpush.msra.mxu0 0.0
    %423 = vmatpush.msra.mxu0 0.0
    %424 = vmatpush.msra.mxu0 0.0
    %425 = vmatpush.msra.mxu0 %v147
    %426 = vmatpush.msra.mxu0 %v146
    %427 = vmatpush.msra.mxu0 %v145
    %428 = vmatpush.msra.mxu0 %v144
    %429 = vmatmul.f32.gmra.mxu0 %v411
    %v430 = vpop.f32.mrf.mxu0
    %v431 = vadd.f32 0.0, %v430
    %432 = vdwg.mxu0
    %v433 = vadd.f32 %v409, %v431
    %v435 = vperm.slane %v406, 0
    %436 = vrot.lane.b32.xlu0 %v435, 32
    %v437 = vpop.permute.xlu0 %436
    %v439 = vsel %vm161, %v405, %v437
    %v441 = vsel %vm276, %v439, 0
    %443 = vmatpush.msra.mxu0 0.0
    %444 = vmatpush.msra.mxu0 0.0
    %445 = vmatpush.msra.mxu0 0.0
    %446 = vmatpush.msra.mxu0 0.0
    %447 = vmatpush.msra.mxu0 0.0
    %448 = vmatpush.msra.mxu0 0.0
    %449 = vmatpush.msra.mxu0 0.0
    %450 = vmatpush.msra.mxu0 0.0
    %451 = vmatpush.msra.mxu0 %v155
    %452 = vmatpush.msra.mxu0 %v154
    %453 = vmatpush.msra.mxu0 %v153
    %454 = vmatpush.msra.mxu0 %v152
    %455 = vmatpush.msra.mxu0 %v151
    %456 = vmatpush.msra.mxu0 %v150
    %457 = vmatpush.msra.mxu0 %v149
    %458 = vmatpush.msra.mxu0 %v148
    %459 = vmatmul.f32.gmra.mxu0 %v441
    %v460 = vpop.f32.mrf.mxu0
    %v461 = vadd.f32 %v157, %v460
    %462 = vdwg.mxu0
    %v463 = vxor.u32 %v433, 2147483648
    %v464 = vmul.f32 %v463, 1.442695
    %v465 = vpow.pop %v464
    %v466 = vadd.f32 %v465, 1.0
    %v467 = vrcp.pop %v466
    %v468 = vmul.f32 %v466, %v467
    %v469 = vsub.f32 1.0, %v468
    %v470 = vmul.f32 %v467, %v469
    %v471 = vadd.f32 %v467, %v470
    %vm472 = vweird.f32 %v466
    %vm473 = vweird.f32 %v467
    %vm474 = vmor %vm472, %vm473
    %v475 = vsel %vm474, %v467, %v471
    %v476 = vand.u32 2147483647, %v466
    %vm477 = vcmp.eq.f32.partialorder %v476, 8.507059e+37
    %v478 = vand.u32 %v466, 2147483648
    %v479 = vor.u32 1.1754944e-38, %v478
    %v480 = vsel %vm477, %v479, %v475
    %v481 = vmul.f32 1.0, %v480
    %v482 = vtanh.pop %v433
    %v484 = vperm.slane %v407, 0
    %485 = vrot.lane.b32.xlu0 %v484, 32
    %v486 = vpop.permute.xlu0 %485
    %v488 = vmul.f32 %v481, %v486
    %490 = vrot.lane.b32.xlu0 %v482, 64
    %v491 = vpop.permute.xlu0 %490
    %v493 = vmul.f32 %v481, %v491
    %495 = vrot.lane.b32.xlu0 %v493, 32
    %v496 = vpop.permute.xlu0 %495
    %v498 = vadd.f32 %v488, %v496
    %v499 = vtanh.pop %v498
    %501 = vrot.lane.b32.xlu0 %v499, 64
    %v502 = vpop.permute.xlu0 %501
    %v504 = vmul.f32 %v481, %v502
    %506 = vrot.lane.b32.xlu0 %v504, 32
    %v507 = vpop.permute.xlu0 %506
    %509 = vst.msk [vmem:[#allocation2] sm:$0x1] %vm232, %v507
    %511 = vrot.lane.b32.xlu0 %v498, 96
    %v512 = vpop.permute.xlu0 %511
    %514 = vst.msk [vmem:[#allocation3] sm:$0x1] %vm232, %v512
    %v515 = vxor.u32 %v461, 2147483648
    %v516 = vmul.f32 %v515, 1.442695
    %v517 = vpow.pop %v516
    %v518 = vadd.f32 %v517, 1.0
    %v519 = vrcp.pop %v518
    %v520 = vmul.f32 %v518, %v519
    %v521 = vsub.f32 1.0, %v520
    %v522 = vmul.f32 %v519, %v521
    %v523 = vadd.f32 %v519, %v522
    %vm524 = vweird.f32 %v518
    %vm525 = vweird.f32 %v519
    %vm526 = vmor %vm524, %vm525
    %v527 = vsel %vm526, %v519, %v523
    %v528 = vand.u32 2147483647, %v518
    %vm529 = vcmp.eq.f32.partialorder %v528, 8.507059e+37
    %v530 = vand.u32 %v518, 2147483648
    %v531 = vor.u32 1.1754944e-38, %v530
    %v532 = vsel %vm529, %v531, %v527
    %v533 = vmul.f32 1.0, %v532
    %v534 = vtanh.pop %v461
    %v536 = vperm.slane %v408, 0
    %537 = vrot.lane.b32.xlu0 %v536, 32
    %v538 = vpop.permute.xlu0 %537
    %v540 = vmul.f32 %v533, %v538
    %542 = vrot.lane.b32.xlu0 %v534, 64
    %v543 = vpop.permute.xlu0 %542
    %v545 = vmul.f32 %v533, %v543
    %547 = vrot.lane.b32.xlu0 %v545, 32
    %v548 = vpop.permute.xlu0 %547
    %v550 = vadd.f32 %v540, %v548
    %v551 = vtanh.pop %v550
    %553 = vrot.lane.b32.xlu0 %v551, 64
    %v554 = vpop.permute.xlu0 %553
    %v556 = vmul.f32 %v533, %v554
    %558 = vrot.lane.b32.xlu0 %v556, 32
    %v559 = vpop.permute.xlu0 %558
    %561 = vst.msk [vmem:[%s240] sm:$0x1] %vm232, %v559
    %563 = vrot.lane.b32.xlu0 %v550, 96
    %v564 = vpop.permute.xlu0 %563
    %566 = vst.msk [vmem:[%s243] sm:$0x1] %vm232, %v564
    %567 = vst.msk [vmem:[#allocation5 + $0x1] sm:$0x1] %vm232, %v559
    %v568 = vld [vmem:[#allocation2] sm:$0x1]
    %v569 = vld [vmem:[%s240] sm:$0x1]
    %v570 = vld [vmem:[#allocation3] sm:$0x1]
    %v571 = vld [vmem:[%s243] sm:$0x1]
    %v572 = vld [vmem:[#allocation4 + $0x3] sm:$0x1]
    %v574 = vsel %vm161, %v568, 0
    %576 = vmatpush.msra.mxu0 0.0
    %577 = vmatpush.msra.mxu0 0.0
    %578 = vmatpush.msra.mxu0 0.0
    %579 = vmatpush.msra.mxu0 0.0
    %580 = vmatpush.msra.mxu0 0.0
    %581 = vmatpush.msra.mxu0 0.0
    %582 = vmatpush.msra.mxu0 0.0
    %583 = vmatpush.msra.mxu0 0.0
    %584 = vmatpush.msra.mxu0 0.0
    %585 = vmatpush.msra.mxu0 0.0
    %586 = vmatpush.msra.mxu0 0.0
    %587 = vmatpush.msra.mxu0 0.0
    %588 = vmatpush.msra.mxu0 %v147
    %589 = vmatpush.msra.mxu0 %v146
    %590 = vmatpush.msra.mxu0 %v145
    %591 = vmatpush.msra.mxu0 %v144
    %592 = vmatmul.f32.gmra.mxu0 %v574
    %v593 = vpop.f32.mrf.mxu0
    %v594 = vadd.f32 0.0, %v593
    %595 = vdwg.mxu0
    %v596 = vadd.f32 %v572, %v594
    %v598 = vperm.slane %v569, 0
    %599 = vrot.lane.b32.xlu0 %v598, 32
    %v600 = vpop.permute.xlu0 %599
    %v602 = vsel %vm161, %v568, %v600
    %v604 = vsel %vm276, %v602, 0
    %606 = vmatpush.msra.mxu0 0.0
    %607 = vmatpush.msra.mxu0 0.0
    %608 = vmatpush.msra.mxu0 0.0
    %609 = vmatpush.msra.mxu0 0.0
    %610 = vmatpush.msra.mxu0 0.0
    %611 = vmatpush.msra.mxu0 0.0
    %612 = vmatpush.msra.mxu0 0.0
    %613 = vmatpush.msra.mxu0 0.0
    %614 = vmatpush.msra.mxu0 %v155
    %615 = vmatpush.msra.mxu0 %v154
    %616 = vmatpush.msra.mxu0 %v153
    %617 = vmatpush.msra.mxu0 %v152
    %618 = vmatpush.msra.mxu0 %v151
    %619 = vmatpush.msra.mxu0 %v150
    %620 = vmatpush.msra.mxu0 %v149
    %621 = vmatpush.msra.mxu0 %v148
    %622 = vmatmul.f32.gmra.mxu0 %v604
    %v623 = vpop.f32.mrf.mxu0
    %v624 = vadd.f32 %v157, %v623
    %625 = vdwg.mxu0
    %v626 = vxor.u32 %v596, 2147483648
    %v627 = vmul.f32 %v626, 1.442695
    %v628 = vpow.pop %v627
    %v629 = vadd.f32 %v628, 1.0
    %v630 = vrcp.pop %v629
    %v631 = vmul.f32 %v629, %v630
    %v632 = vsub.f32 1.0, %v631
    %v633 = vmul.f32 %v630, %v632
    %v634 = vadd.f32 %v630, %v633
    %vm635 = vweird.f32 %v629
    %vm636 = vweird.f32 %v630
    %vm637 = vmor %vm635, %vm636
    %v638 = vsel %vm637, %v630, %v634
    %v639 = vand.u32 2147483647, %v629
    %vm640 = vcmp.eq.f32.partialorder %v639, 8.507059e+37
    %v641 = vand.u32 %v629, 2147483648
    %v642 = vor.u32 1.1754944e-38, %v641
    %v643 = vsel %vm640, %v642, %v638
    %v644 = vmul.f32 1.0, %v643
    %v645 = vtanh.pop %v596
    %v647 = vperm.slane %v570, 0
    %648 = vrot.lane.b32.xlu0 %v647, 32
    %v649 = vpop.permute.xlu0 %648
    %v651 = vmul.f32 %v644, %v649
    %653 = vrot.lane.b32.xlu0 %v645, 64
    %v654 = vpop.permute.xlu0 %653
    %v656 = vmul.f32 %v644, %v654
    %658 = vrot.lane.b32.xlu0 %v656, 32
    %v659 = vpop.permute.xlu0 %658
    %v661 = vadd.f32 %v651, %v659
    %v662 = vtanh.pop %v661
    %664 = vrot.lane.b32.xlu0 %v662, 64
    %v665 = vpop.permute.xlu0 %664
    %v667 = vmul.f32 %v644, %v665
    %669 = vrot.lane.b32.xlu0 %v667, 32
    %v670 = vpop.permute.xlu0 %669
    %672 = vst.msk [vmem:[#allocation2] sm:$0x1] %vm232, %v670
    %674 = vrot.lane.b32.xlu0 %v661, 96
    %v675 = vpop.permute.xlu0 %674
    %677 = vst.msk [vmem:[#allocation3] sm:$0x1] %vm232, %v675
    %v678 = vxor.u32 %v624, 2147483648
    %v679 = vmul.f32 %v678, 1.442695
    %v680 = vpow.pop %v679
    %v681 = vadd.f32 %v680, 1.0
    %v682 = vrcp.pop %v681
    %v683 = vmul.f32 %v681, %v682
    %v684 = vsub.f32 1.0, %v683
    %v685 = vmul.f32 %v682, %v684
    %v686 = vadd.f32 %v682, %v685
    %vm687 = vweird.f32 %v681
    %vm688 = vweird.f32 %v682
    %vm689 = vmor %vm687, %vm688
    %v690 = vsel %vm689, %v682, %v686
    %v691 = vand.u32 2147483647, %v681
    %vm692 = vcmp.eq.f32.partialorder %v691, 8.507059e+37
    %v693 = vand.u32 %v681, 2147483648
    %v694 = vor.u32 1.1754944e-38, %v693
    %v695 = vsel %vm692, %v694, %v690
    %v696 = vmul.f32 1.0, %v695
    %v697 = vtanh.pop %v624
    %v699 = vperm.slane %v571, 0
    %700 = vrot.lane.b32.xlu0 %v699, 32
    %v701 = vpop.permute.xlu0 %700
    %v703 = vmul.f32 %v696, %v701
    %705 = vrot.lane.b32.xlu0 %v697, 64
    %v706 = vpop.permute.xlu0 %705
    %v708 = vmul.f32 %v696, %v706
    %710 = vrot.lane.b32.xlu0 %v708, 32
    %v711 = vpop.permute.xlu0 %710
    %v713 = vadd.f32 %v703, %v711
    %v714 = vtanh.pop %v713
    %716 = vrot.lane.b32.xlu0 %v714, 64
    %v717 = vpop.permute.xlu0 %716
    %v719 = vmul.f32 %v696, %v717
    %721 = vrot.lane.b32.xlu0 %v719, 32
    %v722 = vpop.permute.xlu0 %721
    %724 = vst.msk [vmem:[%s240] sm:$0x1] %vm232, %v722
    %726 = vrot.lane.b32.xlu0 %v713, 96
    %v727 = vpop.permute.xlu0 %726
    %729 = vst.msk [vmem:[%s243] sm:$0x1] %vm232, %v727
    %730 = vst.msk [vmem:[#allocation5 + $0x2] sm:$0x1] %vm232, %v722
    %v731 = vld [vmem:[#allocation2] sm:$0x1]
    %v732 = vld [vmem:[%s240] sm:$0x1]
    %v733 = vld [vmem:[#allocation3] sm:$0x1]
    %v734 = vld [vmem:[%s243] sm:$0x1]
    %v735 = vld [vmem:[#allocation4 + $0x4] sm:$0x1]
    %v737 = vsel %vm161, %v731, 0
    %739 = vmatpush.msra.mxu0 0.0
    %740 = vmatpush.msra.mxu0 0.0
    %741 = vmatpush.msra.mxu0 0.0
    %742 = vmatpush.msra.mxu0 0.0
    %743 = vmatpush.msra.mxu0 0.0
    %744 = vmatpush.msra.mxu0 0.0
    %745 = vmatpush.msra.mxu0 0.0
    %746 = vmatpush.msra.mxu0 0.0
    %747 = vmatpush.msra.mxu0 0.0
    %748 = vmatpush.msra.mxu0 0.0
    %749 = vmatpush.msra.mxu0 0.0
    %750 = vmatpush.msra.mxu0 0.0
    %751 = vmatpush.msra.mxu0 %v147
    %752 = vmatpush.msra.mxu0 %v146
    %753 = vmatpush.msra.mxu0 %v145
    %754 = vmatpush.msra.mxu0 %v144
    %755 = vmatmul.f32.gmra.mxu0 %v737
    %v756 = vpop.f32.mrf.mxu0
    %v757 = vadd.f32 0.0, %v756
    %758 = vdwg.mxu0
    %v759 = vadd.f32 %v735, %v757
    %v761 = vperm.slane %v732, 0
    %762 = vrot.lane.b32.xlu0 %v761, 32
    %v763 = vpop.permute.xlu0 %762
    %v765 = vsel %vm161, %v731, %v763
    %v767 = vsel %vm276, %v765, 0
    %769 = vmatpush.msra.mxu0 0.0
    %770 = vmatpush.msra.mxu0 0.0
    %771 = vmatpush.msra.mxu0 0.0
    %772 = vmatpush.msra.mxu0 0.0
    %773 = vmatpush.msra.mxu0 0.0
    %774 = vmatpush.msra.mxu0 0.0
    %775 = vmatpush.msra.mxu0 0.0
    %776 = vmatpush.msra.mxu0 0.0
    %777 = vmatpush.msra.mxu0 %v155
    %778 = vmatpush.msra.mxu0 %v154
    %779 = vmatpush.msra.mxu0 %v153
    %780 = vmatpush.msra.mxu0 %v152
    %781 = vmatpush.msra.mxu0 %v151
    %782 = vmatpush.msra.mxu0 %v150
    %783 = vmatpush.msra.mxu0 %v149
    %784 = vmatpush.msra.mxu0 %v148
    %785 = vmatmul.f32.gmra.mxu0 %v767
    %v786 = vpop.f32.mrf.mxu0
    %v787 = vadd.f32 %v157, %v786
    %788 = vdwg.mxu0
    %v789 = vxor.u32 %v759, 2147483648
    %v790 = vmul.f32 %v789, 1.442695
    %v791 = vpow.pop %v790
    %v792 = vadd.f32 %v791, 1.0
    %v793 = vrcp.pop %v792
    %v794 = vmul.f32 %v792, %v793
    %v795 = vsub.f32 1.0, %v794
    %v796 = vmul.f32 %v793, %v795
    %v797 = vadd.f32 %v793, %v796
    %vm798 = vweird.f32 %v792
    %vm799 = vweird.f32 %v793
    %vm800 = vmor %vm798, %vm799
    %v801 = vsel %vm800, %v793, %v797
    %v802 = vand.u32 2147483647, %v792
    %vm803 = vcmp.eq.f32.partialorder %v802, 8.507059e+37
    %v804 = vand.u32 %v792, 2147483648
    %v805 = vor.u32 1.1754944e-38, %v804
    %v806 = vsel %vm803, %v805, %v801
    %v807 = vmul.f32 1.0, %v806
    %v808 = vtanh.pop %v759
    %v810 = vperm.slane %v733, 0
    %811 = vrot.lane.b32.xlu0 %v810, 32
    %v812 = vpop.permute.xlu0 %811
    %v814 = vmul.f32 %v807, %v812
    %816 = vrot.lane.b32.xlu0 %v808, 64
    %v817 = vpop.permute.xlu0 %816
    %v819 = vmul.f32 %v807, %v817
    %821 = vrot.lane.b32.xlu0 %v819, 32
    %v822 = vpop.permute.xlu0 %821
    %v824 = vadd.f32 %v814, %v822
    %v825 = vtanh.pop %v824
    %827 = vrot.lane.b32.xlu0 %v825, 64
    %v828 = vpop.permute.xlu0 %827
    %v830 = vmul.f32 %v807, %v828
    %832 = vrot.lane.b32.xlu0 %v830, 32
    %v833 = vpop.permute.xlu0 %832
    %835 = vst.msk [vmem:[#allocation2] sm:$0x1] %vm232, %v833
    %837 = vrot.lane.b32.xlu0 %v824, 96
    %v838 = vpop.permute.xlu0 %837
    %840 = vst.msk [vmem:[#allocation3] sm:$0x1] %vm232, %v838
    %v841 = vxor.u32 %v787, 2147483648
    %v842 = vmul.f32 %v841, 1.442695
    %v843 = vpow.pop %v842
    %v844 = vadd.f32 %v843, 1.0
    %v845 = vrcp.pop %v844
    %v846 = vmul.f32 %v844, %v845
    %v847 = vsub.f32 1.0, %v846
    %v848 = vmul.f32 %v845, %v847
    %v849 = vadd.f32 %v845, %v848
    %vm850 = vweird.f32 %v844
    %vm851 = vweird.f32 %v845
    %vm852 = vmor %vm850, %vm851
    %v853 = vsel %vm852, %v845, %v849
    %v854 = vand.u32 2147483647, %v844
    %vm855 = vcmp.eq.f32.partialorder %v854, 8.507059e+37
    %v856 = vand.u32 %v844, 2147483648
    %v857 = vor.u32 1.1754944e-38, %v856
    %v858 = vsel %vm855, %v857, %v853
    %v859 = vmul.f32 1.0, %v858
    %v860 = vtanh.pop %v787
    %v862 = vperm.slane %v734, 0
    %863 = vrot.lane.b32.xlu0 %v862, 32
    %v864 = vpop.permute.xlu0 %863
    %v866 = vmul.f32 %v859, %v864
    %868 = vrot.lane.b32.xlu0 %v860, 64
    %v869 = vpop.permute.xlu0 %868
    %v871 = vmul.f32 %v859, %v869
    %873 = vrot.lane.b32.xlu0 %v871, 32
    %v874 = vpop.permute.xlu0 %873
    %v876 = vadd.f32 %v866, %v874
    %v877 = vtanh.pop %v876
    %879 = vrot.lane.b32.xlu0 %v877, 64
    %v880 = vpop.permute.xlu0 %879
    %v882 = vmul.f32 %v859, %v880
    %884 = vrot.lane.b32.xlu0 %v882, 32
    %v885 = vpop.permute.xlu0 %884
    %887 = vst.msk [vmem:[%s240] sm:$0x1] %vm232, %v885
    %889 = vrot.lane.b32.xlu0 %v876, 96
    %v890 = vpop.permute.xlu0 %889
    %892 = vst.msk [vmem:[%s243] sm:$0x1] %vm232, %v890
    %893 = vst.msk [vmem:[#allocation5 + $0x3] sm:$0x1] %vm232, %v885
    %v894 = vld [vmem:[#allocation2] sm:$0x1]
    %v895 = vld [vmem:[%s240] sm:$0x1]
    %v896 = vld [vmem:[#allocation3] sm:$0x1]
    %v897 = vld [vmem:[%s243] sm:$0x1]
    %v898 = vld [vmem:[#allocation4 + $0x5] sm:$0x1]
    %v900 = vsel %vm161, %v894, 0
    %902 = vmatpush.msra.mxu0 0.0
    %903 = vmatpush.msra.mxu0 0.0
    %904 = vmatpush.msra.mxu0 0.0
    %905 = vmatpush.msra.mxu0 0.0
    %906 = vmatpush.msra.mxu0 0.0
    %907 = vmatpush.msra.mxu0 0.0
    %908 = vmatpush.msra.mxu0 0.0
    %909 = vmatpush.msra.mxu0 0.0
    %910 = vmatpush.msra.mxu0 0.0
    %911 = vmatpush.msra.mxu0 0.0
    %912 = vmatpush.msra.mxu0 0.0
    %913 = vmatpush.msra.mxu0 0.0
    %914 = vmatpush.msra.mxu0 %v147
    %915 = vmatpush.msra.mxu0 %v146
    %916 = vmatpush.msra.mxu0 %v145
    %917 = vmatpush.msra.mxu0 %v144
    %918 = vmatmul.f32.gmra.mxu0 %v900
    %v919 = vpop.f32.mrf.mxu0
    %v920 = vadd.f32 0.0, %v919
    %921 = vdwg.mxu0
    %v922 = vadd.f32 %v898, %v920
    %v924 = vperm.slane %v895, 0
    %925 = vrot.lane.b32.xlu0 %v924, 32
    %v926 = vpop.permute.xlu0 %925
    %v928 = vsel %vm161, %v894, %v926
    %v930 = vsel %vm276, %v928, 0
    %932 = vmatpush.msra.mxu0 0.0
    %933 = vmatpush.msra.mxu0 0.0
    %934 = vmatpush.msra.mxu0 0.0
    %935 = vmatpush.msra.mxu0 0.0
    %936 = vmatpush.msra.mxu0 0.0
    %937 = vmatpush.msra.mxu0 0.0
    %938 = vmatpush.msra.mxu0 0.0
    %939 = vmatpush.msra.mxu0 0.0
    %940 = vmatpush.msra.mxu0 %v155
    %941 = vmatpush.msra.mxu0 %v154
    %942 = vmatpush.msra.mxu0 %v153
    %943 = vmatpush.msra.mxu0 %v152
    %944 = vmatpush.msra.mxu0 %v151
    %945 = vmatpush.msra.mxu0 %v150
    %946 = vmatpush.msra.mxu0 %v149
    %947 = vmatpush.msra.mxu0 %v148
    %948 = vmatmul.f32.gmra.mxu0 %v930
    %v949 = vpop.f32.mrf.mxu0
    %v950 = vadd.f32 %v157, %v949
    %951 = vdwg.mxu0
    %v952 = vxor.u32 %v922, 2147483648
    %v953 = vmul.f32 %v952, 1.442695
    %v954 = vpow.pop %v953
    %v955 = vadd.f32 %v954, 1.0
    %v956 = vrcp.pop %v955
    %v957 = vmul.f32 %v955, %v956
    %v958 = vsub.f32 1.0, %v957
    %v959 = vmul.f32 %v956, %v958
    %v960 = vadd.f32 %v956, %v959
    %vm961 = vweird.f32 %v955
    %vm962 = vweird.f32 %v956
    %vm963 = vmor %vm961, %vm962
    %v964 = vsel %vm963, %v956, %v960
    %v965 = vand.u32 2147483647, %v955
    %vm966 = vcmp.eq.f32.partialorder %v965, 8.507059e+37
    %v967 = vand.u32 %v955, 2147483648
    %v968 = vor.u32 1.1754944e-38, %v967
    %v969 = vsel %vm966, %v968, %v964
    %v970 = vmul.f32 1.0, %v969
    %v971 = vtanh.pop %v922
    %v973 = vperm.slane %v896, 0
    %974 = vrot.lane.b32.xlu0 %v973, 32
    %v975 = vpop.permute.xlu0 %974
    %v977 = vmul.f32 %v970, %v975
    %979 = vrot.lane.b32.xlu0 %v971, 64
    %v980 = vpop.permute.xlu0 %979
    %v982 = vmul.f32 %v970, %v980
    %984 = vrot.lane.b32.xlu0 %v982, 32
    %v985 = vpop.permute.xlu0 %984
    %v987 = vadd.f32 %v977, %v985
    %v988 = vtanh.pop %v987
    %990 = vrot.lane.b32.xlu0 %v988, 64
    %v991 = vpop.permute.xlu0 %990
    %v993 = vmul.f32 %v970, %v991
    %995 = vrot.lane.b32.xlu0 %v993, 32
    %v996 = vpop.permute.xlu0 %995
    %998 = vst.msk [vmem:[#allocation2] sm:$0x1] %vm232, %v996
    %1000 = vrot.lane.b32.xlu0 %v987, 96
    %v1001 = vpop.permute.xlu0 %1000
    %1003 = vst.msk [vmem:[#allocation3] sm:$0x1] %vm232, %v1001
    %v1004 = vxor.u32 %v950, 2147483648
    %v1005 = vmul.f32 %v1004, 1.442695
    %v1006 = vpow.pop %v1005
    %v1007 = vadd.f32 %v1006, 1.0
    %v1008 = vrcp.pop %v1007
    %v1009 = vmul.f32 %v1007, %v1008
    %v1010 = vsub.f32 1.0, %v1009
    %v1011 = vmul.f32 %v1008, %v1010
    %v1012 = vadd.f32 %v1008, %v1011
    %vm1013 = vweird.f32 %v1007
    %vm1014 = vweird.f32 %v1008
    %vm1015 = vmor %vm1013, %vm1014
    %v1016 = vsel %vm1015, %v1008, %v1012
    %v1017 = vand.u32 2147483647, %v1007
    %vm1018 = vcmp.eq.f32.partialorder %v1017, 8.507059e+37
    %v1019 = vand.u32 %v1007, 2147483648
    %v1020 = vor.u32 1.1754944e-38, %v1019
    %v1021 = vsel %vm1018, %v1020, %v1016
    %v1022 = vmul.f32 1.0, %v1021
    %v1023 = vtanh.pop %v950
    %v1025 = vperm.slane %v897, 0
    %1026 = vrot.lane.b32.xlu0 %v1025, 32
    %v1027 = vpop.permute.xlu0 %1026
    %v1029 = vmul.f32 %v1022, %v1027
    %1031 = vrot.lane.b32.xlu0 %v1023, 64
    %v1032 = vpop.permute.xlu0 %1031
    %v1034 = vmul.f32 %v1022, %v1032
    %1036 = vrot.lane.b32.xlu0 %v1034, 32
    %v1037 = vpop.permute.xlu0 %1036
    %v1039 = vadd.f32 %v1029, %v1037
    %v1040 = vtanh.pop %v1039
    %1042 = vrot.lane.b32.xlu0 %v1040, 64
    %v1043 = vpop.permute.xlu0 %1042
    %v1045 = vmul.f32 %v1022, %v1043
    %1047 = vrot.lane.b32.xlu0 %v1045, 32
    %v1048 = vpop.permute.xlu0 %1047
    %1050 = vst.msk [vmem:[%s240] sm:$0x1] %vm232, %v1048
    %1052 = vrot.lane.b32.xlu0 %v1039, 96
    %v1053 = vpop.permute.xlu0 %1052
    %1055 = vst.msk [vmem:[%s243] sm:$0x1] %vm232, %v1053
    %1056 = vst.msk [vmem:[#allocation5 + $0x4] sm:$0x1] %vm232, %v1048
    %v1057 = vld [vmem:[#allocation2] sm:$0x1]
    %v1058 = vld [vmem:[%s240] sm:$0x1]
    %v1059 = vld [vmem:[#allocation3] sm:$0x1]
    %v1060 = vld [vmem:[%s243] sm:$0x1]
    %v1061 = vld [vmem:[#allocation4 + $0x6] sm:$0x1]
    %v1063 = vsel %vm161, %v1057, 0
    %1065 = vmatpush.msra.mxu0 0.0
    %1066 = vmatpush.msra.mxu0 0.0
    %1067 = vmatpush.msra.mxu0 0.0
    %1068 = vmatpush.msra.mxu0 0.0
    %1069 = vmatpush.msra.mxu0 0.0
    %1070 = vmatpush.msra.mxu0 0.0
    %1071 = vmatpush.msra.mxu0 0.0
    %1072 = vmatpush.msra.mxu0 0.0
    %1073 = vmatpush.msra.mxu0 0.0
    %1074 = vmatpush.msra.mxu0 0.0
    %1075 = vmatpush.msra.mxu0 0.0
    %1076 = vmatpush.msra.mxu0 0.0
    %1077 = vmatpush.msra.mxu0 %v147
    %1078 = vmatpush.msra.mxu0 %v146
    %1079 = vmatpush.msra.mxu0 %v145
    %1080 = vmatpush.msra.mxu0 %v144
    %1081 = vmatmul.f32.gmra.mxu0 %v1063
    %v1082 = vpop.f32.mrf.mxu0
    %v1083 = vadd.f32 0.0, %v1082
    %1084 = vdwg.mxu0
    %v1085 = vadd.f32 %v1061, %v1083
    %v1087 = vperm.slane %v1058, 0
    %1088 = vrot.lane.b32.xlu0 %v1087, 32
    %v1089 = vpop.permute.xlu0 %1088
    %v1091 = vsel %vm161, %v1057, %v1089
    %v1093 = vsel %vm276, %v1091, 0
    %1095 = vmatpush.msra.mxu0 0.0
    %1096 = vmatpush.msra.mxu0 0.0
    %1097 = vmatpush.msra.mxu0 0.0
    %1098 = vmatpush.msra.mxu0 0.0
    %1099 = vmatpush.msra.mxu0 0.0
    %1100 = vmatpush.msra.mxu0 0.0
    %1101 = vmatpush.msra.mxu0 0.0
    %1102 = vmatpush.msra.mxu0 0.0
    %1103 = vmatpush.msra.mxu0 %v155
    %1104 = vmatpush.msra.mxu0 %v154
    %1105 = vmatpush.msra.mxu0 %v153
    %1106 = vmatpush.msra.mxu0 %v152
    %1107 = vmatpush.msra.mxu0 %v151
    %1108 = vmatpush.msra.mxu0 %v150
    %1109 = vmatpush.msra.mxu0 %v149
    %1110 = vmatpush.msra.mxu0 %v148
    %1111 = vmatmul.f32.gmra.mxu0 %v1093
    %v1112 = vpop.f32.mrf.mxu0
    %v1113 = vadd.f32 %v157, %v1112
    %1114 = vdwg.mxu0
    %v1115 = vxor.u32 %v1085, 2147483648
    %v1116 = vmul.f32 %v1115, 1.442695
    %v1117 = vpow.pop %v1116
    %v1118 = vadd.f32 %v1117, 1.0
    %v1119 = vrcp.pop %v1118
    %v1120 = vmul.f32 %v1118, %v1119
    %v1121 = vsub.f32 1.0, %v1120
    %v1122 = vmul.f32 %v1119, %v1121
    %v1123 = vadd.f32 %v1119, %v1122
    %vm1124 = vweird.f32 %v1118
    %vm1125 = vweird.f32 %v1119
    %vm1126 = vmor %vm1124, %vm1125
    %v1127 = vsel %vm1126, %v1119, %v1123
    %v1128 = vand.u32 2147483647, %v1118
    %vm1129 = vcmp.eq.f32.partialorder %v1128, 8.507059e+37
    %v1130 = vand.u32 %v1118, 2147483648
    %v1131 = vor.u32 1.1754944e-38, %v1130
    %v1132 = vsel %vm1129, %v1131, %v1127
    %v1133 = vmul.f32 1.0, %v1132
    %v1134 = vtanh.pop %v1085
    %v1136 = vperm.slane %v1059, 0
    %1137 = vrot.lane.b32.xlu0 %v1136, 32
    %v1138 = vpop.permute.xlu0 %1137
    %v1140 = vmul.f32 %v1133, %v1138
    %1142 = vrot.lane.b32.xlu0 %v1134, 64
    %v1143 = vpop.permute.xlu0 %1142
    %v1145 = vmul.f32 %v1133, %v1143
    %1147 = vrot.lane.b32.xlu0 %v1145, 32
    %v1148 = vpop.permute.xlu0 %1147
    %v1150 = vadd.f32 %v1140, %v1148
    %v1151 = vtanh.pop %v1150
    %1153 = vrot.lane.b32.xlu0 %v1151, 64
    %v1154 = vpop.permute.xlu0 %1153
    %v1156 = vmul.f32 %v1133, %v1154
    %1158 = vrot.lane.b32.xlu0 %v1156, 32
    %v1159 = vpop.permute.xlu0 %1158
    %1161 = vst.msk [vmem:[#allocation2] sm:$0x1] %vm232, %v1159
    %1163 = vrot.lane.b32.xlu0 %v1150, 96
    %v1164 = vpop.permute.xlu0 %1163
    %1166 = vst.msk [vmem:[#allocation3] sm:$0x1] %vm232, %v1164
    %v1167 = vxor.u32 %v1113, 2147483648
    %v1168 = vmul.f32 %v1167, 1.442695
    %v1169 = vpow.pop %v1168
    %v1170 = vadd.f32 %v1169, 1.0
    %v1171 = vrcp.pop %v1170
    %v1172 = vmul.f32 %v1170, %v1171
    %v1173 = vsub.f32 1.0, %v1172
    %v1174 = vmul.f32 %v1171, %v1173
    %v1175 = vadd.f32 %v1171, %v1174
    %vm1176 = vweird.f32 %v1170
    %vm1177 = vweird.f32 %v1171
    %vm1178 = vmor %vm1176, %vm1177
    %v1179 = vsel %vm1178, %v1171, %v1175
    %v1180 = vand.u32 2147483647, %v1170
    %vm1181 = vcmp.eq.f32.partialorder %v1180, 8.507059e+37
    %v1182 = vand.u32 %v1170, 2147483648
    %v1183 = vor.u32 1.1754944e-38, %v1182
    %v1184 = vsel %vm1181, %v1183, %v1179
    %v1185 = vmul.f32 1.0, %v1184
    %v1186 = vtanh.pop %v1113
    %v1188 = vperm.slane %v1060, 0
    %1189 = vrot.lane.b32.xlu0 %v1188, 32
    %v1190 = vpop.permute.xlu0 %1189
    %v1192 = vmul.f32 %v1185, %v1190
    %1194 = vrot.lane.b32.xlu0 %v1186, 64
    %v1195 = vpop.permute.xlu0 %1194
    %v1197 = vmul.f32 %v1185, %v1195
    %1199 = vrot.lane.b32.xlu0 %v1197, 32
    %v1200 = vpop.permute.xlu0 %1199
    %v1202 = vadd.f32 %v1192, %v1200
    %v1203 = vtanh.pop %v1202
    %1205 = vrot.lane.b32.xlu0 %v1203, 64
    %v1206 = vpop.permute.xlu0 %1205
    %v1208 = vmul.f32 %v1185, %v1206
    %1210 = vrot.lane.b32.xlu0 %v1208, 32
    %v1211 = vpop.permute.xlu0 %1210
    %1213 = vst.msk [vmem:[%s240] sm:$0x1] %vm232, %v1211
    %1215 = vrot.lane.b32.xlu0 %v1202, 96
    %v1216 = vpop.permute.xlu0 %1215
    %1218 = vst.msk [vmem:[%s243] sm:$0x1] %vm232, %v1216
    %1219 = vst.msk [vmem:[#allocation5 + $0x5] sm:$0x1] %vm232, %v1211
    %v1220 = vld [vmem:[#allocation2] sm:$0x1]
    %v1221 = vld [vmem:[%s240] sm:$0x1]
    %v1222 = vld [vmem:[#allocation3] sm:$0x1]
    %v1223 = vld [vmem:[%s243] sm:$0x1]
    %v1224 = vld [vmem:[#allocation4 + $0x7] sm:$0x1]
    %v1226 = vsel %vm161, %v1220, 0
    %1228 = vmatpush.msra.mxu0 0.0
    %1229 = vmatpush.msra.mxu0 0.0
    %1230 = vmatpush.msra.mxu0 0.0
    %1231 = vmatpush.msra.mxu0 0.0
    %1232 = vmatpush.msra.mxu0 0.0
    %1233 = vmatpush.msra.mxu0 0.0
    %1234 = vmatpush.msra.mxu0 0.0
    %1235 = vmatpush.msra.mxu0 0.0
    %1236 = vmatpush.msra.mxu0 0.0
    %1237 = vmatpush.msra.mxu0 0.0
    %1238 = vmatpush.msra.mxu0 0.0
    %1239 = vmatpush.msra.mxu0 0.0
    %1240 = vmatpush.msra.mxu0 %v147
    %1241 = vmatpush.msra.mxu0 %v146
    %1242 = vmatpush.msra.mxu0 %v145
    %1243 = vmatpush.msra.mxu0 %v144
    %1244 = vmatmul.f32.gmra.mxu0 %v1226
    %v1245 = vpop.f32.mrf.mxu0
    %v1246 = vadd.f32 0.0, %v1245
    %1247 = vdwg.mxu0
    %v1248 = vadd.f32 %v1224, %v1246
    %v1250 = vperm.slane %v1221, 0
    %1251 = vrot.lane.b32.xlu0 %v1250, 32
    %v1252 = vpop.permute.xlu0 %1251
    %v1254 = vsel %vm161, %v1220, %v1252
    %v1256 = vsel %vm276, %v1254, 0
    %1258 = vmatpush.msra.mxu0 0.0
    %1259 = vmatpush.msra.mxu0 0.0
    %1260 = vmatpush.msra.mxu0 0.0
    %1261 = vmatpush.msra.mxu0 0.0
    %1262 = vmatpush.msra.mxu0 0.0
    %1263 = vmatpush.msra.mxu0 0.0
    %1264 = vmatpush.msra.mxu0 0.0
    %1265 = vmatpush.msra.mxu0 0.0
    %1266 = vmatpush.msra.mxu0 %v155
    %1267 = vmatpush.msra.mxu0 %v154
    %1268 = vmatpush.msra.mxu0 %v153
    %1269 = vmatpush.msra.mxu0 %v152
    %1270 = vmatpush.msra.mxu0 %v151
    %1271 = vmatpush.msra.mxu0 %v150
    %1272 = vmatpush.msra.mxu0 %v149
    %1273 = vmatpush.msra.mxu0 %v148
    %1274 = vmatmul.f32.gmra.mxu0 %v1256
    %v1275 = vpop.f32.mrf.mxu0
    %v1276 = vadd.f32 %v157, %v1275
    %1277 = vdwg.mxu0
    %v1278 = vxor.u32 %v1248, 2147483648
    %v1279 = vmul.f32 %v1278, 1.442695
    %v1280 = vpow.pop %v1279
    %v1281 = vadd.f32 %v1280, 1.0
    %v1282 = vrcp.pop %v1281
    %v1283 = vmul.f32 %v1281, %v1282
    %v1284 = vsub.f32 1.0, %v1283
    %v1285 = vmul.f32 %v1282, %v1284
    %v1286 = vadd.f32 %v1282, %v1285
    %vm1287 = vweird.f32 %v1281
    %vm1288 = vweird.f32 %v1282
    %vm1289 = vmor %vm1287, %vm1288
    %v1290 = vsel %vm1289, %v1282, %v1286
    %v1291 = vand.u32 2147483647, %v1281
    %vm1292 = vcmp.eq.f32.partialorder %v1291, 8.507059e+37
    %v1293 = vand.u32 %v1281, 2147483648
    %v1294 = vor.u32 1.1754944e-38, %v1293
    %v1295 = vsel %vm1292, %v1294, %v1290
    %v1296 = vmul.f32 1.0, %v1295
    %v1297 = vtanh.pop %v1248
    %v1299 = vperm.slane %v1222, 0
    %1300 = vrot.lane.b32.xlu0 %v1299, 32
    %v1301 = vpop.permute.xlu0 %1300
    %v1303 = vmul.f32 %v1296, %v1301
    %1305 = vrot.lane.b32.xlu0 %v1297, 64
    %v1306 = vpop.permute.xlu0 %1305
    %v1308 = vmul.f32 %v1296, %v1306
    %1310 = vrot.lane.b32.xlu0 %v1308, 32
    %v1311 = vpop.permute.xlu0 %1310
    %v1313 = vadd.f32 %v1303, %v1311
    %v1314 = vtanh.pop %v1313
    %1316 = vrot.lane.b32.xlu0 %v1314, 64
    %v1317 = vpop.permute.xlu0 %1316
    %v1319 = vmul.f32 %v1296, %v1317
    %1321 = vrot.lane.b32.xlu0 %v1319, 32
    %v1322 = vpop.permute.xlu0 %1321
    %1324 = vst.msk [vmem:[#allocation2] sm:$0x1] %vm232, %v1322
    %1326 = vrot.lane.b32.xlu0 %v1313, 96
    %v1327 = vpop.permute.xlu0 %1326
    %1329 = vst.msk [vmem:[#allocation3] sm:$0x1] %vm232, %v1327
    %v1330 = vxor.u32 %v1276, 2147483648
    %v1331 = vmul.f32 %v1330, 1.442695
    %v1332 = vpow.pop %v1331
    %v1333 = vadd.f32 %v1332, 1.0
    %v1334 = vrcp.pop %v1333
    %v1335 = vmul.f32 %v1333, %v1334
    %v1336 = vsub.f32 1.0, %v1335
    %v1337 = vmul.f32 %v1334, %v1336
    %v1338 = vadd.f32 %v1334, %v1337
    %vm1339 = vweird.f32 %v1333
    %vm1340 = vweird.f32 %v1334
    %vm1341 = vmor %vm1339, %vm1340
    %v1342 = vsel %vm1341, %v1334, %v1338
    %v1343 = vand.u32 2147483647, %v1333
    %vm1344 = vcmp.eq.f32.partialorder %v1343, 8.507059e+37
    %v1345 = vand.u32 %v1333, 2147483648
    %v1346 = vor.u32 1.1754944e-38, %v1345
    %v1347 = vsel %vm1344, %v1346, %v1342
    %v1348 = vmul.f32 1.0, %v1347
    %v1349 = vtanh.pop %v1276
    %v1351 = vperm.slane %v1223, 0
    %1352 = vrot.lane.b32.xlu0 %v1351, 32
    %v1353 = vpop.permute.xlu0 %1352
    %v1355 = vmul.f32 %v1348, %v1353
    %1357 = vrot.lane.b32.xlu0 %v1349, 64
    %v1358 = vpop.permute.xlu0 %1357
    %v1360 = vmul.f32 %v1348, %v1358
    %1362 = vrot.lane.b32.xlu0 %v1360, 32
    %v1363 = vpop.permute.xlu0 %1362
    %v1365 = vadd.f32 %v1355, %v1363
    %v1366 = vtanh.pop %v1365
    %1368 = vrot.lane.b32.xlu0 %v1366, 64
    %v1369 = vpop.permute.xlu0 %1368
    %v1371 = vmul.f32 %v1348, %v1369
    %1373 = vrot.lane.b32.xlu0 %v1371, 32
    %v1374 = vpop.permute.xlu0 %1373
    %1376 = vst.msk [vmem:[%s240] sm:$0x1] %vm232, %v1374
    %1378 = vrot.lane.b32.xlu0 %v1365, 96
    %v1379 = vpop.permute.xlu0 %1378
    %1381 = vst.msk [vmem:[%s243] sm:$0x1] %vm232, %v1379
    %1382 = vst.msk [vmem:[#allocation5 + $0x6] sm:$0x1] %vm232, %v1374
    %v1383 = vld [vmem:[#allocation2] sm:$0x1]
    %v1384 = vld [vmem:[%s240] sm:$0x1]
    %v1385 = vld [vmem:[%s243] sm:$0x1]
    %v1387 = vperm.slane %v1384, 0
    %1388 = vrot.lane.b32.xlu0 %v1387, 32
    %v1389 = vpop.permute.xlu0 %1388
    %v1391 = vsel %vm161, %v1383, %v1389
    %v1393 = vsel %vm276, %v1391, 0
    %1395 = vmatpush.msra.mxu0 0.0
    %1396 = vmatpush.msra.mxu0 0.0
    %1397 = vmatpush.msra.mxu0 0.0
    %1398 = vmatpush.msra.mxu0 0.0
    %1399 = vmatpush.msra.mxu0 0.0
    %1400 = vmatpush.msra.mxu0 0.0
    %1401 = vmatpush.msra.mxu0 0.0
    %1402 = vmatpush.msra.mxu0 0.0
    %1403 = vmatpush.msra.mxu0 %v155
    %1404 = vmatpush.msra.mxu0 %v154
    %1405 = vmatpush.msra.mxu0 %v153
    %1406 = vmatpush.msra.mxu0 %v152
    %1407 = vmatpush.msra.mxu0 %v151
    %1408 = vmatpush.msra.mxu0 %v150
    %1409 = vmatpush.msra.mxu0 %v149
    %1410 = vmatpush.msra.mxu0 %v148
    %1411 = vmatmul.f32.gmra.mxu0 %v1393
    %v1412 = vpop.f32.mrf.mxu0
    %v1413 = vadd.f32 %v157, %v1412
    %1414 = vdwg.mxu0
    %v1415 = vxor.u32 %v1413, 2147483648
    %v1416 = vmul.f32 %v1415, 1.442695
    %v1417 = vpow.pop %v1416
    %v1418 = vadd.f32 %v1417, 1.0
    %v1419 = vrcp.pop %v1418
    %v1420 = vmul.f32 %v1418, %v1419
    %v1421 = vsub.f32 1.0, %v1420
    %v1422 = vmul.f32 %v1419, %v1421
    %v1423 = vadd.f32 %v1419, %v1422
    %vm1424 = vweird.f32 %v1418
    %vm1425 = vweird.f32 %v1419
    %vm1426 = vmor %vm1424, %vm1425
    %v1427 = vsel %vm1426, %v1419, %v1423
    %v1428 = vand.u32 2147483647, %v1418
    %vm1429 = vcmp.eq.f32.partialorder %v1428, 8.507059e+37
    %v1430 = vand.u32 %v1418, 2147483648
    %v1431 = vor.u32 1.1754944e-38, %v1430
    %v1432 = vsel %vm1429, %v1431, %v1427
    %v1433 = vmul.f32 1.0, %v1432
    %v1434 = vtanh.pop %v1413
    %v1436 = vperm.slane %v1385, 0
    %1437 = vrot.lane.b32.xlu0 %v1436, 32
    %v1438 = vpop.permute.xlu0 %1437
    %v1440 = vmul.f32 %v1433, %v1438
    %1442 = vrot.lane.b32.xlu0 %v1434, 64
    %v1443 = vpop.permute.xlu0 %1442
    %v1445 = vmul.f32 %v1433, %v1443
    %1447 = vrot.lane.b32.xlu0 %v1445, 32
    %v1448 = vpop.permute.xlu0 %1447
    %v1450 = vadd.f32 %v1440, %v1448
    %v1451 = vtanh.pop %v1450
    %1453 = vrot.lane.b32.xlu0 %v1451, 64
    %v1454 = vpop.permute.xlu0 %1453
    %v1456 = vmul.f32 %v1433, %v1454
    %1458 = vrot.lane.b32.xlu0 %v1456, 32
    %v1459 = vpop.permute.xlu0 %1458
    %1461 = vst.msk [vmem:[%s240] sm:$0x1] %vm232, %v1459
    %1463 = vrot.lane.b32.xlu0 %v1450, 96
    %v1464 = vpop.permute.xlu0 %1463
    %1466 = vst.msk [vmem:[%s243] sm:$0x1] %vm232, %v1464
    %1467 = vst.msk [vmem:[#allocation5 + $0x7] sm:$0x1] %vm232, %v1459
    %v1468 = vld [vmem:[#allocation5] sm:$0xff]
    %v1469 = vld [vmem:[#allocation14] sm:$0xff]
    %v1470 = vld [vmem:[#allocation14 + $0x8] sm:$0xff]
    %v1471 = vld [vmem:[#allocation14 + $0x10] sm:$0xff]
    %v1472 = vld [vmem:[#allocation14 + $0x18] sm:$0xff]
    %v1473 = vld [vmem:[%s6] sm:$0x1]
    %v1475 = vperm.slane %v1473, 0
    %v1478 = vsel %vm161, %v1468, 0
    %1480 = vmatpush.msra.mxu0 0.0
    %1481 = vmatpush.msra.mxu0 0.0
    %1482 = vmatpush.msra.mxu0 0.0
    %1483 = vmatpush.msra.mxu0 0.0
    %1484 = vmatpush.msra.mxu0 0.0
    %1485 = vmatpush.msra.mxu0 0.0
    %1486 = vmatpush.msra.mxu0 0.0
    %1487 = vmatpush.msra.mxu0 0.0
    %1488 = vmatpush.msra.mxu0 0.0
    %1489 = vmatpush.msra.mxu0 0.0
    %1490 = vmatpush.msra.mxu0 0.0
    %1491 = vmatpush.msra.mxu0 0.0
    %1492 = vmatpush.msra.mxu0 %v1472
    %1493 = vmatpush.msra.mxu0 %v1471
    %1494 = vmatpush.msra.mxu0 %v1470
    %1495 = vmatpush.msra.mxu0 %v1469
    %1496 = vmatmul.f32.gmra.mxu0 %v1478
    %v1497 = vpop.f32.mrf.mxu0
    %v1498 = vadd.f32 %v1475, %v1497
    %1499 = vdwg.mxu0
    %1500 = vst [vmem:[#allocation15] sm:$0xff] %v1498
    // Predicated region
    $region54: #{tpu_custom_call.1} parent=1 // pred_check
      _
    $region55: #{tpu_custom_call.1} parent=1 // pred_check_branch
      %1502 = sbr.rel (0) target = $region57
    $region56: #{tpu_custom_call.1} parent=1 // pred_region
      %1504 = vsyncadd [#allocation8], 0
      %s1506 = sshll.u32 [#allocation15], 4
      %s1507 = int_to_ptr.vmem [resolvable:$true] %s1506
      %s1508 = sshll.u32 %s7, 4
      %s1509 = int_to_ptr.hbm [resolvable:$true] %s1508
      %1511 = dma.vmem_to_hbm [thread:$0]  %s1507, 128, %s1509, [#allocation8]
    $region57: #{tpu_custom_call.1} parent=1 // pred_fallthru
      _
    // Predicated region
    $region58: #{tpu_custom_call.1} parent=1 // pred_check
      _
    $region59: #{tpu_custom_call.1} parent=1 // pred_check_branch
      %1513 = sbr.rel (0) target = $region61
    $region60: #{tpu_custom_call.1} parent=1 // pred_region
      %1515 = dma.done [#allocation8], 128
    $region61: #{tpu_custom_call.1} parent=1 // pred_fallthru
      _
    %1516 = vsyncpa [#allocation7], 1
    %1517 = vsyncpa [#allocation10], 1
    %1518 = vsyncpa [#allocation13], 1
    %1519 = vsyncpa [#allocation8], 1

</llo_original>
